<compile_context>
chip_gen: v7x
topology: tpu7x:2x2x1
jax: 0.10.0
libtpu: 0.0.40
codegen_flags: <defaults>
</compile_context>

<pallas_src>
import functools

import jax
import jax.numpy as jnp
from jax import lax
from jax.experimental import pallas as pl
from jax.experimental.pallas import tpu as pltpu


# ----------------------------------------------------------------------------
# Tiling / compiler-parameter helpers.
# ----------------------------------------------------------------------------
def _pick_block_m(M, cap=512):
    """Largest divisor of M that is <= cap and a multiple of 8 (else M)."""
    cap = min(cap, M)
    for bm in range(cap, 0, -1):
        if M % bm == 0 and bm % 8 == 0:
            return bm
    return M


def _pick_window_batch(NW, heads, win, cap=8):
    """Windows per grid step: amortize step overhead, respect VMEM, and keep
    the grid extent even when possible (v7x megacore)."""
    bytes_per_win = heads * win * win * 4 * 2          # score + prob f32 tiles
    cap = max(1, min(cap, (16 << 20) // max(bytes_per_win, 1), NW))
    divisors = [d for d in range(1, cap + 1) if NW % d == 0]
    even = [d for d in divisors if (NW // d) % 2 == 0]
    return max(even) if even else max(divisors)


def _mosaic_params(semantics, est_vmem_bytes):
    kwargs = dict(dimension_semantics=semantics)
    if est_vmem_bytes > (24 << 20):
        # Raise the scoped VMEM limit only when needed; cap below v5e/v6e
        # physical.  (On v7x prefer splitting weights instead - see TODO.)
        kwargs["vmem_limit_bytes"] = int(min(96 << 20, est_vmem_bytes * 2))
    return pltpu.CompilerParams(**kwargs)


# ============================================================================
# Kernel 1: LayerNorm (over channels) + fused QKV projection.
#   x2d: (M, C) with M = B*H*W tokens, processed in block_m-row stripes.
# ============================================================================
def _ln_qkv_kernel(x_ref, g_ref, b_ref, w_ref, o_ref, *, eps, mm_dtype):
    x = x_ref[...]
    mu = jnp.mean(x, axis=-1, keepdims=True)
    xc = x - mu
    var = jnp.mean(xc * xc, axis=-1, keepdims=True)
    y = xc * lax.rsqrt(var + eps)
    y = y * g_ref[...] + b_ref[...]
    o_ref[...] = jnp.dot(y.astype(mm_dtype), w_ref[...].astype(mm_dtype),
                         preferred_element_type=jnp.float32).astype(o_ref.dtype)


def ln_qkv_pallas(x2d, gamma, beta, w_qkv, *, block_m, mm_dtype=jnp.float32):
    M, C = x2d.shape
    C3 = w_qkv.shape[1]
    assert M % block_m == 0
    est = 4 * (2 * block_m * (C + C3) + 2 * C * C3)
    return pl.pallas_call(
        functools.partial(_ln_qkv_kernel, eps=1e-5, mm_dtype=mm_dtype),
        out_shape=jax.ShapeDtypeStruct((M, C3), x2d.dtype),
        grid_spec=pltpu.PrefetchScalarGridSpec(
            num_scalar_prefetch=0,
            grid=(M // block_m,),
            in_specs=[
                pl.BlockSpec((block_m, C), lambda i: (i, 0)),   # x stripe
                pl.BlockSpec((1, C), lambda i: (0, 0)),         # gamma1
                pl.BlockSpec((1, C), lambda i: (0, 0)),         # beta1
                pl.BlockSpec((C, C3), lambda i: (0, 0)),        # w_qkv
            ],
            out_specs=pl.BlockSpec((block_m, C3), lambda i: (i, 0)),
        ),
        compiler_params=_mosaic_params(("parallel",), est),
    )(x2d, gamma, beta, w_qkv)


# ============================================================================
# Kernel 2: batched per-window CSWin attention + LePE.
#   q/k/v: (nWin, heads, hd, win) - window tokens on the lane axis.
#   WB windows (all heads) per grid step; lane-dense (.., Cb, win) output.
#   LePE (depthwise 3x3, zero pad, bias) as 9 lane rolls + boundary masks.
# ============================================================================
def _cswin_attn_kernel(q_ref, k_ref, v_ref, wl_ref, o_ref, *,
                       H_sp, W_sp, heads, hd, scale, win, wb, mm_dtype):
    bh = wb * heads
    cb = heads * hd

    q = q_ref[...].reshape(bh, hd, win)
    k = k_ref[...].reshape(bh, hd, win)
    v4 = v_ref[...]
    v = v4.reshape(bh, hd, win)

    # --- batched softmax attention (all windows x heads in one step)
    s = jnp.einsum('bdq,bdk->bqk',
                   (q * scale).astype(mm_dtype), k.astype(mm_dtype),
                   preferred_element_type=jnp.float32)           # (bh, win, win)
    s = s - jnp.max(s, axis=-1, keepdims=True)
    p = jnp.exp(s)
    p = p * pl.reciprocal(jnp.sum(p, axis=-1, keepdims=True), approx=True)
    o = jnp.einsum('bdk,bqk->bdq',
                   v.astype(mm_dtype), p.astype(mm_dtype),
                   preferred_element_type=jnp.float32)           # (bh, hd, win)
    o = o.reshape(wb, cb, win)

    # --- LePE: 3x3 depthwise conv expressed in the (Cb, win) token layout
    vimg = v4.reshape(wb, cb, win)
    wl = wl_ref[...]                                             # (Cb, 10): 9 taps + bias
    tok = lax.broadcasted_iota(jnp.int32, (1, 1, win), 2)
    col = tok % W_sp
    row = tok // W_sp
    acc = None
    for dy in (-1, 0, 1):
        for dx in (-1, 0, 1):
            tap_idx = (dy + 1) * 3 + (dx + 1)
            wgt = wl[:, tap_idx:tap_idx + 1]                     # (Cb, 1)
            off = dy * W_sp + dx
            if dy == 0 and dx == 0:
                tap = vimg * wgt
            else:
                shifted = pltpu.roll(vimg, shift=(-off) % win, axis=2)
                valid = ((col + dx >= 0) & (col + dx < W_sp) &
                         (row + dy >= 0) & (row + dy < H_sp))
                tap = jnp.where(valid, shifted, 0.0) * wgt
            acc = tap if acc is None else acc + tap
    lepe = acc + wl[:, 9:10]                                     # + conv bias

    o_ref[...] = (o + lepe).astype(o_ref.dtype)


def cswin_branch_attn_pallas(qw, kw, vw, wl, *, H_sp, W_sp, scale, wb,
                             mm_dtype=jnp.float32):
    NW, heads, hd, win = qw.shape
    cb = heads * hd
    assert NW % wb == 0
    qkv_spec = pl.BlockSpec((wb, heads, hd, win), lambda n: (n, 0, 0, 0))
    est = 4 * (2 * 4 * wb * cb * win + 3 * wb * heads * win * win + 2 * cb * 10)
    return pl.pallas_call(
        functools.partial(_cswin_attn_kernel, H_sp=H_sp, W_sp=W_sp,
                          heads=heads, hd=hd, scale=scale, win=win, wb=wb,
                          mm_dtype=mm_dtype),
        out_shape=jax.ShapeDtypeStruct((NW, cb, win), qw.dtype),
        grid_spec=pltpu.PrefetchScalarGridSpec(
            num_scalar_prefetch=0,
            grid=(NW // wb,),
            in_specs=[
                qkv_spec, qkv_spec, qkv_spec,                    # q, k, v windows
                pl.BlockSpec((cb, 10), lambda n: (0, 0)),        # lepe taps + bias
            ],
            out_specs=pl.BlockSpec((wb, cb, win), lambda n: (n, 0, 0)),
        ),
        compiler_params=_mosaic_params(("parallel",), est),
    )(qw, kw, vw, wl)


# ============================================================================
# Kernel 3: proj + residual + LayerNorm2 + MLP (fc1 -> GELU -> fc2) + residual.
# ============================================================================
def _proj_mlp_kernel(x_ref, a_ref, wp_ref, bp_ref, g2_ref, b2_ref,
                     w1_ref, b1_ref, w2_ref, b2m_ref, o_ref, *, eps, mm_dtype):
    x = x_ref[...]
    a = a_ref[...]
    h = x + jnp.dot(a.astype(mm_dtype), wp_ref[...].astype(mm_dtype),
                    preferred_element_type=jnp.float32) + bp_ref[...]
    mu = jnp.mean(h, axis=-1, keepdims=True)
    hc = h - mu
    var = jnp.mean(hc * hc, axis=-1, keepdims=True)
    hn = hc * lax.rsqrt(var + eps) * g2_ref[...] + b2_ref[...]
    m = jnp.dot(hn.astype(mm_dtype), w1_ref[...].astype(mm_dtype),
                preferred_element_type=jnp.float32) + b1_ref[...]
    m = jax.nn.gelu(m, approximate=True)   # TODO(synk): exact erf GELU
    m = jnp.dot(m.astype(mm_dtype), w2_ref[...].astype(mm_dtype),
                preferred_element_type=jnp.float32) + b2m_ref[...]
    o_ref[...] = (h + m).astype(o_ref.dtype)


def proj_mlp_pallas(x2d, att2d, w_proj, b_proj, g2, b2,
                    w_fc1, b_fc1, w_fc2, b_fc2, *, block_m,
                    mm_dtype=jnp.float32):
    M, C = x2d.shape
    Hd = w_fc1.shape[1]
    assert M % block_m == 0
    row = lambda i: (i, 0)
    full = lambda i: (0, 0)
    est = 4 * (2 * 3 * block_m * C + block_m * Hd + 2 * (C * C + 2 * C * Hd))
    return pl.pallas_call(
        functools.partial(_proj_mlp_kernel, eps=1e-5, mm_dtype=mm_dtype),
        out_shape=jax.ShapeDtypeStruct((M, C), x2d.dtype),
        grid_spec=pltpu.PrefetchScalarGridSpec(
            num_scalar_prefetch=0,
            grid=(M // block_m,),
            in_specs=[
                pl.BlockSpec((block_m, C), row),     # x
                pl.BlockSpec((block_m, C), row),     # attention output
                pl.BlockSpec((C, C), full),          # w_proj
                pl.BlockSpec((1, C), full),          # b_proj
                pl.BlockSpec((1, C), full),          # gamma2
                pl.BlockSpec((1, C), full),          # beta2
                pl.BlockSpec((C, Hd), full),         # w_fc1
                pl.BlockSpec((1, Hd), full),         # b_fc1
                pl.BlockSpec((Hd, C), full),         # w_fc2
                pl.BlockSpec((1, C), full),          # b_fc2
            ],
            out_specs=pl.BlockSpec((block_m, C), row),
        ),
        compiler_params=_mosaic_params(("parallel",), est),
    )(x2d, att2d, w_proj, b_proj, g2, b2, w_fc1, b_fc1, w_fc2, b_fc2)


# ----------------------------------------------------------------------------
# Wrapper-side layout plumbing.
# Channel-major ("chw") windows feed the lane-dense attention kernel.
# Token-major helpers are kept for the pure-JAX reference.
# ----------------------------------------------------------------------------
def window_partition_chw(t, H, W, H_sp, W_sp, heads):
    """(B, H*W, Cb) tokens -> (B*nWin, heads, Cb//heads, H_sp*W_sp); tokens on lanes."""
    B, L, Cb = t.shape
    hd = Cb // heads
    t = t.reshape(B, H // H_sp, H_sp, W // W_sp, W_sp, Cb)
    t = t.transpose(0, 1, 3, 5, 2, 4)            # (B, nh, nw, Cb, H_sp, W_sp)
    return t.reshape(B * (H // H_sp) * (W // W_sp), heads, hd, H_sp * W_sp)


def window_reverse_chw(t, H, W, H_sp, W_sp, B):
    """(B*nWin, Cb, H_sp*W_sp) -> (B, H*W, Cb)."""
    Cb = t.shape[1]
    t = t.reshape(B, H // H_sp, W // W_sp, Cb, H_sp, W_sp)
    t = t.transpose(0, 1, 4, 2, 5, 3)            # (B, nh, H_sp, nw, W_sp, Cb)
    return t.reshape(B, H * W, Cb)


def window_partition(t, H, W, H_sp, W_sp):
    """(B, H*W, C) -> (B*nWin, H_sp*W_sp, C)  (token-major, reference only)."""
    B, L, C = t.shape
    t = t.reshape(B, H // H_sp, H_sp, W // W_sp, W_sp, C)
    t = t.transpose(0, 1, 3, 2, 4, 5)
    return t.reshape(-1, H_sp * W_sp, C)


def window_reverse(t, H, W, H_sp, W_sp, B):
    """(B*nWin, H_sp*W_sp, C) -> (B, H*W, C)  (token-major, reference only)."""
    C = t.shape[-1]
    t = t.reshape(B, H // H_sp, W // W_sp, H_sp, W_sp, C)
    t = t.transpose(0, 1, 3, 2, 4, 5)
    return t.reshape(B, H * W, C)


def cswin_block_pallas(x, p, *, reso, split_size, num_heads,
                       matmul_dtype=jnp.float32):
    B, L, C = x.shape
    assert L == reso * reso, "flatten img_tokens has wrong size"
    M = B * L
    x2d = x.reshape(M, C)
    block_m = _pick_block_m(M)

    qkv = ln_qkv_pallas(x2d, p['g1'], p['b1'], p['w_qkv'], block_m=block_m,
                        mm_dtype=matmul_dtype)
    qkv = qkv.reshape(B, L, 3 * C)

    last_stage = (reso == split_size)
    branches = [(reso, reso)] if last_stage else [(reso, split_size), (split_size, reso)]
    n_br = len(branches)
    Cb = C // n_br
    heads_b = num_heads // n_br
    scale = (Cb // heads_b) ** -0.5

    outs = []
    for br, (H_sp, W_sp) in enumerate(branches):
        qs = qkv[..., br * Cb:(br + 1) * Cb]
        ks = qkv[..., C + br * Cb:C + (br + 1) * Cb]
        vs = qkv[..., 2 * C + br * Cb:2 * C + (br + 1) * Cb]
        qw = window_partition_chw(qs, reso, reso, H_sp, W_sp, heads_b)
        kw = window_partition_chw(ks, reso, reso, H_sp, W_sp, heads_b)
        vw = window_partition_chw(vs, reso, reso, H_sp, W_sp, heads_b)
        NW, _, _, win = qw.shape
        wb = _pick_window_batch(NW, heads_b, win)
        # 3x3 depthwise taps (transposed to channel-major) + bias -> (Cb, 10)
        wl = jnp.concatenate([p['w_lepe'][br].T, p['b_lepe'][br].T], axis=1)
        ow = cswin_branch_attn_pallas(qw, kw, vw, wl, H_sp=H_sp, W_sp=W_sp,
                                      scale=scale, wb=wb, mm_dtype=matmul_dtype)
        outs.append(window_reverse_chw(ow, reso, reso, H_sp, W_sp, B))
    att2d = jnp.concatenate(outs, axis=-1).reshape(M, C)

    out = proj_mlp_pallas(x2d, att2d, p['w_proj'], p['b_proj'], p['g2'], p['b2'],
                          p['w_fc1'], p['b_fc1'], p['w_fc2'], p['b_fc2'],
                          block_m=block_m, mm_dtype=matmul_dtype)
    return out.reshape(B, L, C)


# ----------------------------------------------------------------------------
# Pure-JAX reference (for correctness check only).
# ----------------------------------------------------------------------------
def _layer_norm(t, g, b, eps=1e-5):
    mu = jnp.mean(t, axis=-1, keepdims=True)
    var = jnp.mean((t - mu) ** 2, axis=-1, keepdims=True)
    return (t - mu) * lax.rsqrt(var + eps) * g + b


def cswin_block_ref(x, p, *, reso, split_size, num_heads):
    B, L, C = x.shape
    hp = lax.Precision.HIGHEST
    img = _layer_norm(x, p['g1'], p['b1'])
    qkv = jnp.einsum('blc,cd->bld', img, p['w_qkv'], precision=hp)
    q, k, v = qkv[..., :C], qkv[..., C:2 * C], qkv[..., 2 * C:]

    last_stage = (reso == split_size)
    branches = [(reso, reso)] if last_stage else [(reso, split_size), (split_size, reso)]
    n_br = len(branches)
    Cb = C // n_br
    heads_b = num_heads // n_br
    hd = Cb // heads_b
    scale = hd ** -0.5

    outs = []
    for br, (H_sp, W_sp) in enumerate(branches):
        sl = slice(br * Cb, (br + 1) * Cb)
        qw = window_partition(q[..., sl], reso, reso, H_sp, W_sp)
        kw = window_partition(k[..., sl], reso, reso, H_sp, W_sp)
        vw = window_partition(v[..., sl], reso, reso, H_sp, W_sp)
        NW, win, _ = qw.shape
        qh = qw.reshape(NW, win, heads_b, hd).transpose(0, 2, 1, 3) * scale
        kh = kw.reshape(NW, win, heads_b, hd).transpose(0, 2, 1, 3)
        vh = vw.reshape(NW, win, heads_b, hd).transpose(0, 2, 1, 3)
        s = jnp.einsum('nhqd,nhkd->nhqk', qh, kh, precision=hp)
        a = jax.nn.softmax(s, axis=-1)
        o = jnp.einsum('nhqk,nhkd->nhqd', a, vh, precision=hp)
        o = o.transpose(0, 2, 1, 3).reshape(NW, win, Cb)
        vimg = vw.reshape(NW, H_sp, W_sp, Cb)
        wf = p['w_lepe'][br].reshape(3, 3, 1, Cb)
        lepe = lax.conv_general_dilated(
            vimg, wf, (1, 1), 'SAME',
            dimension_numbers=('NHWC', 'HWIO', 'NHWC'),
            feature_group_count=Cb, precision=hp) + p['b_lepe'][br]
        o = o + lepe.reshape(NW, win, Cb)
        outs.append(window_reverse(o, reso, reso, H_sp, W_sp, B))
    att = jnp.concatenate(outs, axis=-1)
    att = jnp.einsum('blc,cd->bld', att, p['w_proj'], precision=hp) + p['b_proj']
    h = x + att
    m = _layer_norm(h, p['g2'], p['b2'])
    m = jax.nn.gelu(jnp.einsum('blc,ch->blh', m, p['w_fc1'], precision=hp) + p['b_fc1'],
                    approximate=True)
    m = jnp.einsum('blh,hc->blc', m, p['w_fc2'], precision=hp) + p['b_fc2']
    return h + m


# ----------------------------------------------------------------------------
if __name__ == "__main__":
    key = jax.random.PRNGKey(0)
    B, dim, reso, split_size, num_heads = 2, 32, 16, 8, 4
    mlp_ratio = 4.0
    L = reso * reso
    hidden = int(dim * mlp_ratio)
    Cb = dim // 2                           # per-branch channels (branch_num = 2)

    ks = iter(jax.random.split(key, 32))

    def rnd(shape, s=1.0):
        return s * jax.random.normal(next(ks), shape, jnp.float32)

    x = rnd((B, L, dim))
    params = {
        'g1': 1.0 + 0.1 * rnd((1, dim)), 'b1': 0.05 * rnd((1, dim)),
        'w_qkv': rnd((dim, 3 * dim), dim ** -0.5),                      # qkv_bias=False
        'w_lepe': [rnd((9, Cb), 0.2), rnd((9, Cb), 0.2)],               # per-branch dw 3x3
        'b_lepe': [0.05 * rnd((1, Cb)), 0.05 * rnd((1, Cb))],
        'w_proj': rnd((dim, dim), dim ** -0.5), 'b_proj': 0.05 * rnd((1, dim)),
        'g2': 1.0 + 0.1 * rnd((1, dim)), 'b2': 0.05 * rnd((1, dim)),
        'w_fc1': rnd((dim, hidden), dim ** -0.5), 'b_fc1': 0.05 * rnd((1, hidden)),
        'w_fc2': rnd((hidden, dim), hidden ** -0.5), 'b_fc2': 0.05 * rnd((1, dim)),
    }

    out = cswin_block_pallas(x, params, reso=reso, split_size=split_size,
                             num_heads=num_heads)
    out = jax.block_until_ready(out)

    ref = cswin_block_ref(x, params, reso=reso, split_size=split_size,
                          num_heads=num_heads)
    assert out.shape == (B, L, dim)
    max_err = float(jnp.max(jnp.abs(out - ref)))
    assert jnp.allclose(out, ref, atol=2e-2, rtol=2e-2), f"max abs err {max_err}"

    print("KERNEL_OK")
</pallas_src>

<mosaic_0001>
module attributes {stable_mosaic.version = 11 : i64} {
  func.func @_ln_qkv_kernel(%arg0: i32, %arg1: memref<512x32xf32, #tpu.memory_space<vmem>>, %arg2: memref<1x32xf32, #tpu.memory_space<vmem>>, %arg3: memref<1x32xf32, #tpu.memory_space<vmem>>, %arg4: memref<32x96xf32, #tpu.memory_space<vmem>>, %arg5: memref<512x96xf32, #tpu.memory_space<vmem>>) attributes {dimension_semantics = [#tpu.dimension_semantics<parallel>], iteration_bounds = array<i64: 1>, scalar_prefetch = 0 : i64, scratch_operands = 0 : i64, tpu.core_type = #tpu.core_type<tc>, window_params = [{transform_indices = @transform_0, window_bounds = array<i64: 512, 32>}, {pipeline_mode = #tpu.pipeline_mode<synchronous>, transform_indices = @transform_1, window_bounds = array<i64: 1, 32>}, {pipeline_mode = #tpu.pipeline_mode<synchronous>, transform_indices = @transform_2, window_bounds = array<i64: 1, 32>}, {pipeline_mode = #tpu.pipeline_mode<synchronous>, transform_indices = @transform_3, window_bounds = array<i64: 32, 96>}, {transform_indices = @transform_4, window_bounds = array<i64: 512, 96>}]} {
    %c0 = arith.constant 0 : index
    %c0_0 = arith.constant 0 : index
    %0 = vector.load %arg1[%c0, %c0_0] : memref<512x32xf32, #tpu.memory_space<vmem>>, vector<512x32xf32>
    %cst = arith.constant dense<0.000000e+00> : vector<512xf32>
    %1 = vector.multi_reduction <add>, %0, %cst [1] : vector<512x32xf32> to vector<512xf32>
    %2 = vector.shape_cast %1 : vector<512xf32> to vector<512x1xf32>
    %cst_1 = arith.constant 3.200000e+01 : f32
    %3 = vector.broadcast %cst_1 : f32 to vector<512x1xf32>
    %4 = arith.divf %2, %3 : vector<512x1xf32>
    %5 = vector.broadcast %4 : vector<512x1xf32> to vector<512x32xf32>
    %6 = arith.subf %0, %5 : vector<512x32xf32>
    %7 = arith.mulf %6, %6 : vector<512x32xf32>
    %cst_2 = arith.constant dense<0.000000e+00> : vector<512xf32>
    %8 = vector.multi_reduction <add>, %7, %cst_2 [1] : vector<512x32xf32> to vector<512xf32>
    %9 = vector.shape_cast %8 : vector<512xf32> to vector<512x1xf32>
    %cst_3 = arith.constant 3.200000e+01 : f32
    %10 = vector.broadcast %cst_3 : f32 to vector<512x1xf32>
    %11 = arith.divf %9, %10 : vector<512x1xf32>
    %cst_4 = arith.constant 9.99999974E-6 : f32
    %12 = vector.broadcast %cst_4 : f32 to vector<512x1xf32>
    %13 = arith.addf %11, %12 : vector<512x1xf32>
    %14 = math.rsqrt %13 : vector<512x1xf32>
    %15 = vector.broadcast %14 : vector<512x1xf32> to vector<512x32xf32>
    %16 = arith.mulf %6, %15 : vector<512x32xf32>
    %c0_5 = arith.constant 0 : index
    %c0_6 = arith.constant 0 : index
    %17 = vector.load %arg2[%c0_5, %c0_6] : memref<1x32xf32, #tpu.memory_space<vmem>>, vector<1x32xf32>
    %18 = vector.broadcast %17 : vector<1x32xf32> to vector<512x32xf32>
    %19 = arith.mulf %16, %18 : vector<512x32xf32>
    %c0_7 = arith.constant 0 : index
    %c0_8 = arith.constant 0 : index
    %20 = vector.load %arg3[%c0_7, %c0_8] : memref<1x32xf32, #tpu.memory_space<vmem>>, vector<1x32xf32>
    %21 = vector.broadcast %20 : vector<1x32xf32> to vector<512x32xf32>
    %22 = arith.addf %19, %21 : vector<512x32xf32>
    %c0_9 = arith.constant 0 : index
    %c0_10 = arith.constant 0 : index
    %23 = vector.load %arg4[%c0_9, %c0_10] : memref<32x96xf32, #tpu.memory_space<vmem>>, vector<32x96xf32>
    %cst_11 = arith.constant dense<0.000000e+00> : vector<512x96xf32>
    %24 = tpu.matmul %22, %23, %cst_11 {dimension_numbers = #tpu.dot_dimension_numbers<[1], [0], [0], [1], [0, 0, 1, 1], [], []>} : vector<512x32xf32>, vector<32x96xf32>, vector<512x96xf32> -> vector<512x96xf32>
    %c0_12 = arith.constant 0 : index
    %c0_13 = arith.constant 0 : index
    %25 = vector.load %arg5[%c0_12, %c0_13] : memref<512x96xf32, #tpu.memory_space<vmem>>, vector<512x96xf32>
    tpu.vector_store %arg5[%c0_12, %c0_13], %24 {strides = array<i32>} : memref<512x96xf32, #tpu.memory_space<vmem>>, vector<512x96xf32>,
    return
  }
  func.func @transform_0(%arg0: i32) -> (i32, i32) {
    %c0_i32 = arith.constant 0 : i32
    %c0_i32_0 = arith.constant 0 : i32
    return %arg0, %c0_i32 : i32, i32
  }
  func.func @transform_1(%arg0: i32) -> (i32, i32) {
    %c0_i32 = arith.constant 0 : i32
    %c0_i32_0 = arith.constant 0 : i32
    %c0_i32_1 = arith.constant 0 : i32
    return %c0_i32, %c0_i32_0 : i32, i32
  }
  func.func @transform_2(%arg0: i32) -> (i32, i32) {
    %c0_i32 = arith.constant 0 : i32
    %c0_i32_0 = arith.constant 0 : i32
    %c0_i32_1 = arith.constant 0 : i32
    return %c0_i32, %c0_i32_0 : i32, i32
  }
  func.func @transform_3(%arg0: i32) -> (i32, i32) {
    %c0_i32 = arith.constant 0 : i32
    %c0_i32_0 = arith.constant 0 : i32
    %c0_i32_1 = arith.constant 0 : i32
    return %c0_i32, %c0_i32_0 : i32, i32
  }
  func.func @transform_4(%arg0: i32) -> (i32, i32) {
    %c0_i32 = arith.constant 0 : i32
    %c0_i32_0 = arith.constant 0 : i32
    return %arg0, %c0_i32 : i32, i32
  }
}

</mosaic_0001>

<llo_original>
// kernel: tpu_custom_call.1
$region0: #{tpu_custom_call.1}
  #allocation0 [shape = 'u32[]', space=smem, size = 0x4, offset = 0x4, fixed_abs, tag = 'smem constant byte address 0x4 - core index']
  #allocation1 [shape = 'u32[144,128]{1,0:T(1,128)}', space=vmem, size = 0x12000, scoped, tag = 'internal scratch']
  %s0 = inlined_call_operand.vmem [shape: f32[512,32], index: 0, kind: input, shape index: {}]
  %s1 = inlined_call_operand.vmem [shape: f32[1,32], index: 1, kind: input, shape index: {}]
  %s2 = inlined_call_operand.vmem [shape: f32[1,32], index: 2, kind: input, shape index: {}]
  %s3 = inlined_call_operand.vmem [shape: f32[32,96], index: 3, kind: input, shape index: {}]
  %s4 = inlined_call_operand.vmem [shape: f32[512,96], index: 4, kind: output, shape index: {}]
  %s5 = sld [smem:[#allocation0]]
  $region26: #{tpu_custom_call.1} parent=0
    _
  %s7 = ssub.s32 1, %s5
  %s8 = scalar_select 0, %s7, %s5
  // Predicated region
  $region2: #{tpu_custom_call.1} parent=0 // pred_check
    _
  $region3: #{tpu_custom_call.1} parent=0 // pred_check_branch
    %10 = sbr.rel (0) target = $region5
  $region4: #{tpu_custom_call.1} parent=0 // pred_region
    _
  $region5: #{tpu_custom_call.1} parent=0 // pred_fallthru
    _
  // Predicated region
  $region6: #{tpu_custom_call.1} parent=0 // pred_check
    _
  $region7: #{tpu_custom_call.1} parent=0 // pred_check_branch
    %12 = sbr.rel (0) target = $region9
  $region8: #{tpu_custom_call.1} parent=0 // pred_region
    _
  $region9: #{tpu_custom_call.1} parent=0 // pred_fallthru
    _
  // Predicated region
  $region10: #{tpu_custom_call.1} parent=0 // pred_check
    _
  $region11: #{tpu_custom_call.1} parent=0 // pred_check_branch
    %14 = sbr.rel (0) target = $region13
  $region12: #{tpu_custom_call.1} parent=0 // pred_region
    _
  $region13: #{tpu_custom_call.1} parent=0 // pred_fallthru
    _
  // Predicated region
  $region14: #{tpu_custom_call.1} parent=0 // pred_check
    _
  $region15: #{tpu_custom_call.1} parent=0 // pred_check_branch
    %16 = sbr.rel (0) target = $region17
  $region16: #{tpu_custom_call.1} parent=0 // pred_region
    _
  $region17: #{tpu_custom_call.1} parent=0 // pred_fallthru
    _
  %v17 = vld [vmem:[%s0] sm:$0xff]
  %v18 = vld [vmem:[%s0 + $0x8] sm:$0xff]
  %v19 = vld [vmem:[%s0 + $0x10] sm:$0xff]
  %v20 = vld [vmem:[%s0 + $0x18] sm:$0xff]
  %v21 = vld [vmem:[%s0 + $0x20] sm:$0xff]
  %v22 = vld [vmem:[%s0 + $0x28] sm:$0xff]
  %v23 = vld [vmem:[%s0 + $0x30] sm:$0xff]
  %v24 = vld [vmem:[%s0 + $0x38] sm:$0xff]
  %v25 = vld [vmem:[%s0 + $0x40] sm:$0xff]
  %v26 = vld [vmem:[%s0 + $0x48] sm:$0xff]
  %v27 = vld [vmem:[%s0 + $0x50] sm:$0xff]
  %v28 = vld [vmem:[%s0 + $0x58] sm:$0xff]
  %v29 = vld [vmem:[%s0 + $0x60] sm:$0xff]
  %v30 = vld [vmem:[%s0 + $0x68] sm:$0xff]
  %v31 = vld [vmem:[%s0 + $0x70] sm:$0xff]
  %v32 = vld [vmem:[%s0 + $0x78] sm:$0xff]
  %v33 = vld [vmem:[%s0 + $0x80] sm:$0xff]
  %v34 = vld [vmem:[%s0 + $0x88] sm:$0xff]
  %v35 = vld [vmem:[%s0 + $0x90] sm:$0xff]
  %v36 = vld [vmem:[%s0 + $0x98] sm:$0xff]
  %v37 = vld [vmem:[%s0 + $0xa0] sm:$0xff]
  %v38 = vld [vmem:[%s0 + $0xa8] sm:$0xff]
  %v39 = vld [vmem:[%s0 + $0xb0] sm:$0xff]
  %v40 = vld [vmem:[%s0 + $0xb8] sm:$0xff]
  %v41 = vld [vmem:[%s0 + $0xc0] sm:$0xff]
  %v42 = vld [vmem:[%s0 + $0xc8] sm:$0xff]
  %v43 = vld [vmem:[%s0 + $0xd0] sm:$0xff]
  %v44 = vld [vmem:[%s0 + $0xd8] sm:$0xff]
  %v45 = vld [vmem:[%s0 + $0xe0] sm:$0xff]
  %v46 = vld [vmem:[%s0 + $0xe8] sm:$0xff]
  %v47 = vld [vmem:[%s0 + $0xf0] sm:$0xff]
  %v48 = vld [vmem:[%s0 + $0xf8] sm:$0xff]
  %v49 = vld [vmem:[%s0 + $0x100] sm:$0xff]
  %v50 = vld [vmem:[%s0 + $0x108] sm:$0xff]
  %v51 = vld [vmem:[%s0 + $0x110] sm:$0xff]
  %v52 = vld [vmem:[%s0 + $0x118] sm:$0xff]
  %v53 = vld [vmem:[%s0 + $0x120] sm:$0xff]
  %v54 = vld [vmem:[%s0 + $0x128] sm:$0xff]
  %v55 = vld [vmem:[%s0 + $0x130] sm:$0xff]
  %v56 = vld [vmem:[%s0 + $0x138] sm:$0xff]
  %v57 = vld [vmem:[%s0 + $0x140] sm:$0xff]
  %v58 = vld [vmem:[%s0 + $0x148] sm:$0xff]
  %v59 = vld [vmem:[%s0 + $0x150] sm:$0xff]
  %v60 = vld [vmem:[%s0 + $0x158] sm:$0xff]
  %v61 = vld [vmem:[%s0 + $0x160] sm:$0xff]
  %v62 = vld [vmem:[%s0 + $0x168] sm:$0xff]
  %v63 = vld [vmem:[%s0 + $0x170] sm:$0xff]
  %v64 = vld [vmem:[%s0 + $0x178] sm:$0xff]
  %v65 = vld [vmem:[%s0 + $0x180] sm:$0xff]
  %v66 = vld [vmem:[%s0 + $0x188] sm:$0xff]
  %v67 = vld [vmem:[%s0 + $0x190] sm:$0xff]
  %v68 = vld [vmem:[%s0 + $0x198] sm:$0xff]
  %v69 = vld [vmem:[%s0 + $0x1a0] sm:$0xff]
  %v70 = vld [vmem:[%s0 + $0x1a8] sm:$0xff]
  %v71 = vld [vmem:[%s0 + $0x1b0] sm:$0xff]
  %v72 = vld [vmem:[%s0 + $0x1b8] sm:$0xff]
  %v73 = vld [vmem:[%s0 + $0x1c0] sm:$0xff]
  %v74 = vld [vmem:[%s0 + $0x1c8] sm:$0xff]
  %v75 = vld [vmem:[%s0 + $0x1d0] sm:$0xff]
  %v76 = vld [vmem:[%s0 + $0x1d8] sm:$0xff]
  %v77 = vld [vmem:[%s0 + $0x1e0] sm:$0xff]
  %v78 = vld [vmem:[%s0 + $0x1e8] sm:$0xff]
  %v79 = vld [vmem:[%s0 + $0x1f0] sm:$0xff]
  %v80 = vld [vmem:[%s0 + $0x1f8] sm:$0xff]
  %vm81 = vcmask 261120
  %v82 = vsel %vm81, %v17, 0.0
  %83 = vadd.xlane.f32.xlu0 %v82
  %v84 = vpop.xlane.xlu0 %83
  %v85 = vsel %vm81, %v18, 0.0
  %86 = vadd.xlane.f32.xlu0 %v85
  %v87 = vpop.xlane.xlu0 %86
  %v88 = vsel %vm81, %v19, 0.0
  %89 = vadd.xlane.f32.xlu0 %v88
  %v90 = vpop.xlane.xlu0 %89
  %v91 = vsel %vm81, %v20, 0.0
  %92 = vadd.xlane.f32.xlu0 %v91
  %v93 = vpop.xlane.xlu0 %92
  %v94 = vsel %vm81, %v21, 0.0
  %95 = vadd.xlane.f32.xlu0 %v94
  %v96 = vpop.xlane.xlu0 %95
  %v97 = vsel %vm81, %v22, 0.0
  %98 = vadd.xlane.f32.xlu0 %v97
  %v99 = vpop.xlane.xlu0 %98
  %v100 = vsel %vm81, %v23, 0.0
  %101 = vadd.xlane.f32.xlu0 %v100
  %v102 = vpop.xlane.xlu0 %101
  %v103 = vsel %vm81, %v24, 0.0
  %104 = vadd.xlane.f32.xlu0 %v103
  %v105 = vpop.xlane.xlu0 %104
  %v106 = vsel %vm81, %v25, 0.0
  %107 = vadd.xlane.f32.xlu0 %v106
  %v108 = vpop.xlane.xlu0 %107
  %v109 = vsel %vm81, %v26, 0.0
  %110 = vadd.xlane.f32.xlu0 %v109
  %v111 = vpop.xlane.xlu0 %110
  %v112 = vsel %vm81, %v27, 0.0
  %113 = vadd.xlane.f32.xlu0 %v112
  %v114 = vpop.xlane.xlu0 %113
  %v115 = vsel %vm81, %v28, 0.0
  %116 = vadd.xlane.f32.xlu0 %v115
  %v117 = vpop.xlane.xlu0 %116
  %v118 = vsel %vm81, %v29, 0.0
  %119 = vadd.xlane.f32.xlu0 %v118
  %v120 = vpop.xlane.xlu0 %119
  %v121 = vsel %vm81, %v30, 0.0
  %122 = vadd.xlane.f32.xlu0 %v121
  %v123 = vpop.xlane.xlu0 %122
  %v124 = vsel %vm81, %v31, 0.0
  %125 = vadd.xlane.f32.xlu0 %v124
  %v126 = vpop.xlane.xlu0 %125
  %v127 = vsel %vm81, %v32, 0.0
  %128 = vadd.xlane.f32.xlu0 %v127
  %v129 = vpop.xlane.xlu0 %128
  %v130 = vsel %vm81, %v33, 0.0
  %131 = vadd.xlane.f32.xlu0 %v130
  %v132 = vpop.xlane.xlu0 %131
  %v133 = vsel %vm81, %v34, 0.0
  %134 = vadd.xlane.f32.xlu0 %v133
  %v135 = vpop.xlane.xlu0 %134
  %v136 = vsel %vm81, %v35, 0.0
  %137 = vadd.xlane.f32.xlu0 %v136
  %v138 = vpop.xlane.xlu0 %137
  %v139 = vsel %vm81, %v36, 0.0
  %140 = vadd.xlane.f32.xlu0 %v139
  %v141 = vpop.xlane.xlu0 %140
  %v142 = vsel %vm81, %v37, 0.0
  %143 = vadd.xlane.f32.xlu0 %v142
  %v144 = vpop.xlane.xlu0 %143
  %v145 = vsel %vm81, %v38, 0.0
  %146 = vadd.xlane.f32.xlu0 %v145
  %v147 = vpop.xlane.xlu0 %146
  %v148 = vsel %vm81, %v39, 0.0
  %149 = vadd.xlane.f32.xlu0 %v148
  %v150 = vpop.xlane.xlu0 %149
  %v151 = vsel %vm81, %v40, 0.0
  %152 = vadd.xlane.f32.xlu0 %v151
  %v153 = vpop.xlane.xlu0 %152
  %v154 = vsel %vm81, %v41, 0.0
  %155 = vadd.xlane.f32.xlu0 %v154
  %v156 = vpop.xlane.xlu0 %155
  %v157 = vsel %vm81, %v42, 0.0
  %158 = vadd.xlane.f32.xlu0 %v157
  %v159 = vpop.xlane.xlu0 %158
  %v160 = vsel %vm81, %v43, 0.0
  %161 = vadd.xlane.f32.xlu0 %v160
  %v162 = vpop.xlane.xlu0 %161
  %v163 = vsel %vm81, %v44, 0.0
  %164 = vadd.xlane.f32.xlu0 %v163
  %v165 = vpop.xlane.xlu0 %164
  %v166 = vsel %vm81, %v45, 0.0
  %167 = vadd.xlane.f32.xlu0 %v166
  %v168 = vpop.xlane.xlu0 %167
  %v169 = vsel %vm81, %v46, 0.0
  %170 = vadd.xlane.f32.xlu0 %v169
  %v171 = vpop.xlane.xlu0 %170
  %v172 = vsel %vm81, %v47, 0.0
  %173 = vadd.xlane.f32.xlu0 %v172
  %v174 = vpop.xlane.xlu0 %173
  %v175 = vsel %vm81, %v48, 0.0
  %176 = vadd.xlane.f32.xlu0 %v175
  %v177 = vpop.xlane.xlu0 %176
  %v178 = vsel %vm81, %v49, 0.0
  %179 = vadd.xlane.f32.xlu0 %v178
  %v180 = vpop.xlane.xlu0 %179
  %v181 = vsel %vm81, %v50, 0.0
  %182 = vadd.xlane.f32.xlu0 %v181
  %v183 = vpop.xlane.xlu0 %182
  %v184 = vsel %vm81, %v51, 0.0
  %185 = vadd.xlane.f32.xlu0 %v184
  %v186 = vpop.xlane.xlu0 %185
  %v187 = vsel %vm81, %v52, 0.0
  %188 = vadd.xlane.f32.xlu0 %v187
  %v189 = vpop.xlane.xlu0 %188
  %v190 = vsel %vm81, %v53, 0.0
  %191 = vadd.xlane.f32.xlu0 %v190
  %v192 = vpop.xlane.xlu0 %191
  %v193 = vsel %vm81, %v54, 0.0
  %194 = vadd.xlane.f32.xlu0 %v193
  %v195 = vpop.xlane.xlu0 %194
  %v196 = vsel %vm81, %v55, 0.0
  %197 = vadd.xlane.f32.xlu0 %v196
  %v198 = vpop.xlane.xlu0 %197
  %v199 = vsel %vm81, %v56, 0.0
  %200 = vadd.xlane.f32.xlu0 %v199
  %v201 = vpop.xlane.xlu0 %200
  %v202 = vsel %vm81, %v57, 0.0
  %203 = vadd.xlane.f32.xlu0 %v202
  %v204 = vpop.xlane.xlu0 %203
  %v205 = vsel %vm81, %v58, 0.0
  %206 = vadd.xlane.f32.xlu0 %v205
  %v207 = vpop.xlane.xlu0 %206
  %v208 = vsel %vm81, %v59, 0.0
  %209 = vadd.xlane.f32.xlu0 %v208
  %v210 = vpop.xlane.xlu0 %209
  %v211 = vsel %vm81, %v60, 0.0
  %212 = vadd.xlane.f32.xlu0 %v211
  %v213 = vpop.xlane.xlu0 %212
  %v214 = vsel %vm81, %v61, 0.0
  %215 = vadd.xlane.f32.xlu0 %v214
  %v216 = vpop.xlane.xlu0 %215
  %v217 = vsel %vm81, %v62, 0.0
  %218 = vadd.xlane.f32.xlu0 %v217
  %v219 = vpop.xlane.xlu0 %218
  %v220 = vsel %vm81, %v63, 0.0
  %221 = vadd.xlane.f32.xlu0 %v220
  %v222 = vpop.xlane.xlu0 %221
  %v223 = vsel %vm81, %v64, 0.0
  %224 = vadd.xlane.f32.xlu0 %v223
  %v225 = vpop.xlane.xlu0 %224
  %v226 = vsel %vm81, %v65, 0.0
  %227 = vadd.xlane.f32.xlu0 %v226
  %v228 = vpop.xlane.xlu0 %227
  %v229 = vsel %vm81, %v66, 0.0
  %230 = vadd.xlane.f32.xlu0 %v229
  %v231 = vpop.xlane.xlu0 %230
  %v232 = vsel %vm81, %v67, 0.0
  %233 = vadd.xlane.f32.xlu0 %v232
  %v234 = vpop.xlane.xlu0 %233
  %v235 = vsel %vm81, %v68, 0.0
  %236 = vadd.xlane.f32.xlu0 %v235
  %v237 = vpop.xlane.xlu0 %236
  %v238 = vsel %vm81, %v69, 0.0
  %239 = vadd.xlane.f32.xlu0 %v238
  %v240 = vpop.xlane.xlu0 %239
  %v241 = vsel %vm81, %v70, 0.0
  %242 = vadd.xlane.f32.xlu0 %v241
  %v243 = vpop.xlane.xlu0 %242
  %v244 = vsel %vm81, %v71, 0.0
  %245 = vadd.xlane.f32.xlu0 %v244
  %v246 = vpop.xlane.xlu0 %245
  %v247 = vsel %vm81, %v72, 0.0
  %248 = vadd.xlane.f32.xlu0 %v247
  %v249 = vpop.xlane.xlu0 %248
  %v250 = vsel %vm81, %v73, 0.0
  %251 = vadd.xlane.f32.xlu0 %v250
  %v252 = vpop.xlane.xlu0 %251
  %v253 = vsel %vm81, %v74, 0.0
  %254 = vadd.xlane.f32.xlu0 %v253
  %v255 = vpop.xlane.xlu0 %254
  %v256 = vsel %vm81, %v75, 0.0
  %257 = vadd.xlane.f32.xlu0 %v256
  %v258 = vpop.xlane.xlu0 %257
  %v259 = vsel %vm81, %v76, 0.0
  %260 = vadd.xlane.f32.xlu0 %v259
  %v261 = vpop.xlane.xlu0 %260
  %v262 = vsel %vm81, %v77, 0.0
  %263 = vadd.xlane.f32.xlu0 %v262
  %v264 = vpop.xlane.xlu0 %263
  %v265 = vsel %vm81, %v78, 0.0
  %266 = vadd.xlane.f32.xlu0 %v265
  %v267 = vpop.xlane.xlu0 %266
  %v268 = vsel %vm81, %v79, 0.0
  %269 = vadd.xlane.f32.xlu0 %v268
  %v270 = vpop.xlane.xlu0 %269
  %v271 = vsel %vm81, %v80, 0.0
  %272 = vadd.xlane.f32.xlu0 %v271
  %v273 = vpop.xlane.xlu0 %272
  %v274 = vrcp.pop 32.0
  %v275 = vmul.f32 %v84, %v274
  %v276 = vmul.f32 %v87, %v274
  %v277 = vmul.f32 %v90, %v274
  %v278 = vmul.f32 %v93, %v274
  %v279 = vmul.f32 %v96, %v274
  %v280 = vmul.f32 %v99, %v274
  %v281 = vmul.f32 %v102, %v274
  %v282 = vmul.f32 %v105, %v274
  %v283 = vmul.f32 %v108, %v274
  %v284 = vmul.f32 %v111, %v274
  %v285 = vmul.f32 %v114, %v274
  %v286 = vmul.f32 %v117, %v274
  %v287 = vmul.f32 %v120, %v274
  %v288 = vmul.f32 %v123, %v274
  %v289 = vmul.f32 %v126, %v274
  %v290 = vmul.f32 %v129, %v274
  %v291 = vmul.f32 %v132, %v274
  %v292 = vmul.f32 %v135, %v274
  %v293 = vmul.f32 %v138, %v274
  %v294 = vmul.f32 %v141, %v274
  %v295 = vmul.f32 %v144, %v274
  %v296 = vmul.f32 %v147, %v274
  %v297 = vmul.f32 %v150, %v274
  %v298 = vmul.f32 %v153, %v274
  %v299 = vmul.f32 %v156, %v274
  %v300 = vmul.f32 %v159, %v274
  %v301 = vmul.f32 %v162, %v274
  %v302 = vmul.f32 %v165, %v274
  %v303 = vmul.f32 %v168, %v274
  %v304 = vmul.f32 %v171, %v274
  %v305 = vmul.f32 %v174, %v274
  %v306 = vmul.f32 %v177, %v274
  %v307 = vmul.f32 %v180, %v274
  %v308 = vmul.f32 %v183, %v274
  %v309 = vmul.f32 %v186, %v274
  %v310 = vmul.f32 %v189, %v274
  %v311 = vmul.f32 %v192, %v274
  %v312 = vmul.f32 %v195, %v274
  %v313 = vmul.f32 %v198, %v274
  %v314 = vmul.f32 %v201, %v274
  %v315 = vmul.f32 %v204, %v274
  %v316 = vmul.f32 %v207, %v274
  %v317 = vmul.f32 %v210, %v274
  %v318 = vmul.f32 %v213, %v274
  %v319 = vmul.f32 %v216, %v274
  %v320 = vmul.f32 %v219, %v274
  %v321 = vmul.f32 %v222, %v274
  %v322 = vmul.f32 %v225, %v274
  %v323 = vmul.f32 %v228, %v274
  %v324 = vmul.f32 %v231, %v274
  %v325 = vmul.f32 %v234, %v274
  %v326 = vmul.f32 %v237, %v274
  %v327 = vmul.f32 %v240, %v274
  %v328 = vmul.f32 %v243, %v274
  %v329 = vmul.f32 %v246, %v274
  %v330 = vmul.f32 %v249, %v274
  %v331 = vmul.f32 %v252, %v274
  %v332 = vmul.f32 %v255, %v274
  %v333 = vmul.f32 %v258, %v274
  %v334 = vmul.f32 %v261, %v274
  %v335 = vmul.f32 %v264, %v274
  %v336 = vmul.f32 %v267, %v274
  %v337 = vmul.f32 %v270, %v274
  %v338 = vmul.f32 %v273, %v274
  %v339 = vsub.f32 %v17, %v275
  %v340 = vsub.f32 %v18, %v276
  %v341 = vsub.f32 %v19, %v277
  %v342 = vsub.f32 %v20, %v278
  %v343 = vsub.f32 %v21, %v279
  %v344 = vsub.f32 %v22, %v280
  %v345 = vsub.f32 %v23, %v281
  %v346 = vsub.f32 %v24, %v282
  %v347 = vsub.f32 %v25, %v283
  %v348 = vsub.f32 %v26, %v284
  %v349 = vsub.f32 %v27, %v285
  %v350 = vsub.f32 %v28, %v286
  %v351 = vsub.f32 %v29, %v287
  %v352 = vsub.f32 %v30, %v288
  %v353 = vsub.f32 %v31, %v289
  %v354 = vsub.f32 %v32, %v290
  %v355 = vsub.f32 %v33, %v291
  %v356 = vsub.f32 %v34, %v292
  %v357 = vsub.f32 %v35, %v293
  %v358 = vsub.f32 %v36, %v294
  %v359 = vsub.f32 %v37, %v295
  %v360 = vsub.f32 %v38, %v296
  %v361 = vsub.f32 %v39, %v297
  %v362 = vsub.f32 %v40, %v298
  %v363 = vsub.f32 %v41, %v299
  %v364 = vsub.f32 %v42, %v300
  %v365 = vsub.f32 %v43, %v301
  %v366 = vsub.f32 %v44, %v302
  %v367 = vsub.f32 %v45, %v303
  %v368 = vsub.f32 %v46, %v304
  %v369 = vsub.f32 %v47, %v305
  %v370 = vsub.f32 %v48, %v306
  %v371 = vsub.f32 %v49, %v307
  %v372 = vsub.f32 %v50, %v308
  %v373 = vsub.f32 %v51, %v309
  %v374 = vsub.f32 %v52, %v310
  %v375 = vsub.f32 %v53, %v311
  %v376 = vsub.f32 %v54, %v312
  %v377 = vsub.f32 %v55, %v313
  %v378 = vsub.f32 %v56, %v314
  %v379 = vsub.f32 %v57, %v315
  %v380 = vsub.f32 %v58, %v316
  %v381 = vsub.f32 %v59, %v317
  %v382 = vsub.f32 %v60, %v318
  %v383 = vsub.f32 %v61, %v319
  %v384 = vsub.f32 %v62, %v320
  %v385 = vsub.f32 %v63, %v321
  %v386 = vsub.f32 %v64, %v322
  %v387 = vsub.f32 %v65, %v323
  %v388 = vsub.f32 %v66, %v324
  %v389 = vsub.f32 %v67, %v325
  %v390 = vsub.f32 %v68, %v326
  %v391 = vsub.f32 %v69, %v327
  %v392 = vsub.f32 %v70, %v328
  %v393 = vsub.f32 %v71, %v329
  %v394 = vsub.f32 %v72, %v330
  %v395 = vsub.f32 %v73, %v331
  %v396 = vsub.f32 %v74, %v332
  %v397 = vsub.f32 %v75, %v333
  %v398 = vsub.f32 %v76, %v334
  %v399 = vsub.f32 %v77, %v335
  %v400 = vsub.f32 %v78, %v336
  %v401 = vsub.f32 %v79, %v337
  %v402 = vsub.f32 %v80, %v338
  %v403 = vmul.f32 %v339, %v339
  %v404 = vmul.f32 %v340, %v340
  %v405 = vmul.f32 %v341, %v341
  %v406 = vmul.f32 %v342, %v342
  %v407 = vmul.f32 %v343, %v343
  %v408 = vmul.f32 %v344, %v344
  %v409 = vmul.f32 %v345, %v345
  %v410 = vmul.f32 %v346, %v346
  %v411 = vmul.f32 %v347, %v347
  %v412 = vmul.f32 %v348, %v348
  %v413 = vmul.f32 %v349, %v349
  %v414 = vmul.f32 %v350, %v350
  %v415 = vmul.f32 %v351, %v351
  %v416 = vmul.f32 %v352, %v352
  %v417 = vmul.f32 %v353, %v353
  %v418 = vmul.f32 %v354, %v354
  %v419 = vmul.f32 %v355, %v355
  %v420 = vmul.f32 %v356, %v356
  %v421 = vmul.f32 %v357, %v357
  %v422 = vmul.f32 %v358, %v358
  %v423 = vmul.f32 %v359, %v359
  %v424 = vmul.f32 %v360, %v360
  %v425 = vmul.f32 %v361, %v361
  %v426 = vmul.f32 %v362, %v362
  %v427 = vmul.f32 %v363, %v363
  %v428 = vmul.f32 %v364, %v364
  %v429 = vmul.f32 %v365, %v365
  %v430 = vmul.f32 %v366, %v366
  %v431 = vmul.f32 %v367, %v367
  %v432 = vmul.f32 %v368, %v368
  %v433 = vmul.f32 %v369, %v369
  %v434 = vmul.f32 %v370, %v370
  %v435 = vmul.f32 %v371, %v371
  %v436 = vmul.f32 %v372, %v372
  %v437 = vmul.f32 %v373, %v373
  %v438 = vmul.f32 %v374, %v374
  %v439 = vmul.f32 %v375, %v375
  %v440 = vmul.f32 %v376, %v376
  %v441 = vmul.f32 %v377, %v377
  %v442 = vmul.f32 %v378, %v378
  %v443 = vmul.f32 %v379, %v379
  %v444 = vmul.f32 %v380, %v380
  %v445 = vmul.f32 %v381, %v381
  %v446 = vmul.f32 %v382, %v382
  %v447 = vmul.f32 %v383, %v383
  %v448 = vmul.f32 %v384, %v384
  %v449 = vmul.f32 %v385, %v385
  %v450 = vmul.f32 %v386, %v386
  %v451 = vmul.f32 %v387, %v387
  %v452 = vmul.f32 %v388, %v388
  %v453 = vmul.f32 %v389, %v389
  %v454 = vmul.f32 %v390, %v390
  %v455 = vmul.f32 %v391, %v391
  %v456 = vmul.f32 %v392, %v392
  %v457 = vmul.f32 %v393, %v393
  %v458 = vmul.f32 %v394, %v394
  %v459 = vmul.f32 %v395, %v395
  %v460 = vmul.f32 %v396, %v396
  %v461 = vmul.f32 %v397, %v397
  %v462 = vmul.f32 %v398, %v398
  %v463 = vmul.f32 %v399, %v399
  %v464 = vmul.f32 %v400, %v400
  %v465 = vmul.f32 %v401, %v401
  %v466 = vmul.f32 %v402, %v402
  %v467 = vsel %vm81, %v403, 0.0
  %468 = vadd.xlane.f32.xlu0 %v467
  %v469 = vpop.xlane.xlu0 %468
  %v470 = vsel %vm81, %v404, 0.0
  %471 = vadd.xlane.f32.xlu0 %v470
  %v472 = vpop.xlane.xlu0 %471
  %v473 = vsel %vm81, %v405, 0.0
  %474 = vadd.xlane.f32.xlu0 %v473
  %v475 = vpop.xlane.xlu0 %474
  %v476 = vsel %vm81, %v406, 0.0
  %477 = vadd.xlane.f32.xlu0 %v476
  %v478 = vpop.xlane.xlu0 %477
  %v479 = vsel %vm81, %v407, 0.0
  %480 = vadd.xlane.f32.xlu0 %v479
  %v481 = vpop.xlane.xlu0 %480
  %v482 = vsel %vm81, %v408, 0.0
  %483 = vadd.xlane.f32.xlu0 %v482
  %v484 = vpop.xlane.xlu0 %483
  %v485 = vsel %vm81, %v409, 0.0
  %486 = vadd.xlane.f32.xlu0 %v485
  %v487 = vpop.xlane.xlu0 %486
  %v488 = vsel %vm81, %v410, 0.0
  %489 = vadd.xlane.f32.xlu0 %v488
  %v490 = vpop.xlane.xlu0 %489
  %v491 = vsel %vm81, %v411, 0.0
  %492 = vadd.xlane.f32.xlu0 %v491
  %v493 = vpop.xlane.xlu0 %492
  %v494 = vsel %vm81, %v412, 0.0
  %495 = vadd.xlane.f32.xlu0 %v494
  %v496 = vpop.xlane.xlu0 %495
  %v497 = vsel %vm81, %v413, 0.0
  %498 = vadd.xlane.f32.xlu0 %v497
  %v499 = vpop.xlane.xlu0 %498
  %v500 = vsel %vm81, %v414, 0.0
  %501 = vadd.xlane.f32.xlu0 %v500
  %v502 = vpop.xlane.xlu0 %501
  %v503 = vsel %vm81, %v415, 0.0
  %504 = vadd.xlane.f32.xlu0 %v503
  %v505 = vpop.xlane.xlu0 %504
  %v506 = vsel %vm81, %v416, 0.0
  %507 = vadd.xlane.f32.xlu0 %v506
  %v508 = vpop.xlane.xlu0 %507
  %v509 = vsel %vm81, %v417, 0.0
  %510 = vadd.xlane.f32.xlu0 %v509
  %v511 = vpop.xlane.xlu0 %510
  %v512 = vsel %vm81, %v418, 0.0
  %513 = vadd.xlane.f32.xlu0 %v512
  %v514 = vpop.xlane.xlu0 %513
  %v515 = vsel %vm81, %v419, 0.0
  %516 = vadd.xlane.f32.xlu0 %v515
  %v517 = vpop.xlane.xlu0 %516
  %v518 = vsel %vm81, %v420, 0.0
  %519 = vadd.xlane.f32.xlu0 %v518
  %v520 = vpop.xlane.xlu0 %519
  %v521 = vsel %vm81, %v421, 0.0
  %522 = vadd.xlane.f32.xlu0 %v521
  %v523 = vpop.xlane.xlu0 %522
  %v524 = vsel %vm81, %v422, 0.0
  %525 = vadd.xlane.f32.xlu0 %v524
  %v526 = vpop.xlane.xlu0 %525
  %v527 = vsel %vm81, %v423, 0.0
  %528 = vadd.xlane.f32.xlu0 %v527
  %v529 = vpop.xlane.xlu0 %528
  %v530 = vsel %vm81, %v424, 0.0
  %531 = vadd.xlane.f32.xlu0 %v530
  %v532 = vpop.xlane.xlu0 %531
  %v533 = vsel %vm81, %v425, 0.0
  %534 = vadd.xlane.f32.xlu0 %v533
  %v535 = vpop.xlane.xlu0 %534
  %v536 = vsel %vm81, %v426, 0.0
  %537 = vadd.xlane.f32.xlu0 %v536
  %v538 = vpop.xlane.xlu0 %537
  %v539 = vsel %vm81, %v427, 0.0
  %540 = vadd.xlane.f32.xlu0 %v539
  %v541 = vpop.xlane.xlu0 %540
  %v542 = vsel %vm81, %v428, 0.0
  %543 = vadd.xlane.f32.xlu0 %v542
  %v544 = vpop.xlane.xlu0 %543
  %v545 = vsel %vm81, %v429, 0.0
  %546 = vadd.xlane.f32.xlu0 %v545
  %v547 = vpop.xlane.xlu0 %546
  %v548 = vsel %vm81, %v430, 0.0
  %549 = vadd.xlane.f32.xlu0 %v548
  %v550 = vpop.xlane.xlu0 %549
  %v551 = vsel %vm81, %v431, 0.0
  %552 = vadd.xlane.f32.xlu0 %v551
  %v553 = vpop.xlane.xlu0 %552
  %v554 = vsel %vm81, %v432, 0.0
  %555 = vadd.xlane.f32.xlu0 %v554
  %v556 = vpop.xlane.xlu0 %555
  %v557 = vsel %vm81, %v433, 0.0
  %558 = vadd.xlane.f32.xlu0 %v557
  %v559 = vpop.xlane.xlu0 %558
  %v560 = vsel %vm81, %v434, 0.0
  %561 = vadd.xlane.f32.xlu0 %v560
  %v562 = vpop.xlane.xlu0 %561
  %v563 = vsel %vm81, %v435, 0.0
  %564 = vadd.xlane.f32.xlu0 %v563
  %v565 = vpop.xlane.xlu0 %564
  %v566 = vsel %vm81, %v436, 0.0
  %567 = vadd.xlane.f32.xlu0 %v566
  %v568 = vpop.xlane.xlu0 %567
  %v569 = vsel %vm81, %v437, 0.0
  %570 = vadd.xlane.f32.xlu0 %v569
  %v571 = vpop.xlane.xlu0 %570
  %v572 = vsel %vm81, %v438, 0.0
  %573 = vadd.xlane.f32.xlu0 %v572
  %v574 = vpop.xlane.xlu0 %573
  %v575 = vsel %vm81, %v439, 0.0
  %576 = vadd.xlane.f32.xlu0 %v575
  %v577 = vpop.xlane.xlu0 %576
  %v578 = vsel %vm81, %v440, 0.0
  %579 = vadd.xlane.f32.xlu0 %v578
  %v580 = vpop.xlane.xlu0 %579
  %v581 = vsel %vm81, %v441, 0.0
  %582 = vadd.xlane.f32.xlu0 %v581
  %v583 = vpop.xlane.xlu0 %582
  %v584 = vsel %vm81, %v442, 0.0
  %585 = vadd.xlane.f32.xlu0 %v584
  %v586 = vpop.xlane.xlu0 %585
  %v587 = vsel %vm81, %v443, 0.0
  %588 = vadd.xlane.f32.xlu0 %v587
  %v589 = vpop.xlane.xlu0 %588
  %v590 = vsel %vm81, %v444, 0.0
  %591 = vadd.xlane.f32.xlu0 %v590
  %v592 = vpop.xlane.xlu0 %591
  %v593 = vsel %vm81, %v445, 0.0
  %594 = vadd.xlane.f32.xlu0 %v593
  %v595 = vpop.xlane.xlu0 %594
  %v596 = vsel %vm81, %v446, 0.0
  %597 = vadd.xlane.f32.xlu0 %v596
  %v598 = vpop.xlane.xlu0 %597
  %v599 = vsel %vm81, %v447, 0.0
  %600 = vadd.xlane.f32.xlu0 %v599
  %v601 = vpop.xlane.xlu0 %600
  %v602 = vsel %vm81, %v448, 0.0
  %603 = vadd.xlane.f32.xlu0 %v602
  %v604 = vpop.xlane.xlu0 %603
  %v605 = vsel %vm81, %v449, 0.0
  %606 = vadd.xlane.f32.xlu0 %v605
  %v607 = vpop.xlane.xlu0 %606
  %v608 = vsel %vm81, %v450, 0.0
  %609 = vadd.xlane.f32.xlu0 %v608
  %v610 = vpop.xlane.xlu0 %609
  %v611 = vsel %vm81, %v451, 0.0
  %612 = vadd.xlane.f32.xlu0 %v611
  %v613 = vpop.xlane.xlu0 %612
  %v614 = vsel %vm81, %v452, 0.0
  %615 = vadd.xlane.f32.xlu0 %v614
  %v616 = vpop.xlane.xlu0 %615
  %v617 = vsel %vm81, %v453, 0.0
  %618 = vadd.xlane.f32.xlu0 %v617
  %v619 = vpop.xlane.xlu0 %618
  %v620 = vsel %vm81, %v454, 0.0
  %621 = vadd.xlane.f32.xlu0 %v620
  %v622 = vpop.xlane.xlu0 %621
  %v623 = vsel %vm81, %v455, 0.0
  %624 = vadd.xlane.f32.xlu0 %v623
  %v625 = vpop.xlane.xlu0 %624
  %v626 = vsel %vm81, %v456, 0.0
  %627 = vadd.xlane.f32.xlu0 %v626
  %v628 = vpop.xlane.xlu0 %627
  %v629 = vsel %vm81, %v457, 0.0
  %630 = vadd.xlane.f32.xlu0 %v629
  %v631 = vpop.xlane.xlu0 %630
  %v632 = vsel %vm81, %v458, 0.0
  %633 = vadd.xlane.f32.xlu0 %v632
  %v634 = vpop.xlane.xlu0 %633
  %v635 = vsel %vm81, %v459, 0.0
  %636 = vadd.xlane.f32.xlu0 %v635
  %v637 = vpop.xlane.xlu0 %636
  %v638 = vsel %vm81, %v460, 0.0
  %639 = vadd.xlane.f32.xlu0 %v638
  %v640 = vpop.xlane.xlu0 %639
  %v641 = vsel %vm81, %v461, 0.0
  %642 = vadd.xlane.f32.xlu0 %v641
  %v643 = vpop.xlane.xlu0 %642
  %v644 = vsel %vm81, %v462, 0.0
  %645 = vadd.xlane.f32.xlu0 %v644
  %v646 = vpop.xlane.xlu0 %645
  %v647 = vsel %vm81, %v463, 0.0
  %648 = vadd.xlane.f32.xlu0 %v647
  %v649 = vpop.xlane.xlu0 %648
  %v650 = vsel %vm81, %v464, 0.0
  %651 = vadd.xlane.f32.xlu0 %v650
  %v652 = vpop.xlane.xlu0 %651
  %v653 = vsel %vm81, %v465, 0.0
  %654 = vadd.xlane.f32.xlu0 %v653
  %v655 = vpop.xlane.xlu0 %654
  %v656 = vsel %vm81, %v466, 0.0
  %657 = vadd.xlane.f32.xlu0 %v656
  %v658 = vpop.xlane.xlu0 %657
  %v659 = vmul.f32 %v469, %v274
  %v660 = vmul.f32 %v472, %v274
  %v661 = vmul.f32 %v475, %v274
  %v662 = vmul.f32 %v478, %v274
  %v663 = vmul.f32 %v481, %v274
  %v664 = vmul.f32 %v484, %v274
  %v665 = vmul.f32 %v487, %v274
  %v666 = vmul.f32 %v490, %v274
  %v667 = vmul.f32 %v493, %v274
  %v668 = vmul.f32 %v496, %v274
  %v669 = vmul.f32 %v499, %v274
  %v670 = vmul.f32 %v502, %v274
  %v671 = vmul.f32 %v505, %v274
  %v672 = vmul.f32 %v508, %v274
  %v673 = vmul.f32 %v511, %v274
  %v674 = vmul.f32 %v514, %v274
  %v675 = vmul.f32 %v517, %v274
  %v676 = vmul.f32 %v520, %v274
  %v677 = vmul.f32 %v523, %v274
  %v678 = vmul.f32 %v526, %v274
  %v679 = vmul.f32 %v529, %v274
  %v680 = vmul.f32 %v532, %v274
  %v681 = vmul.f32 %v535, %v274
  %v682 = vmul.f32 %v538, %v274
  %v683 = vmul.f32 %v541, %v274
  %v684 = vmul.f32 %v544, %v274
  %v685 = vmul.f32 %v547, %v274
  %v686 = vmul.f32 %v550, %v274
  %v687 = vmul.f32 %v553, %v274
  %v688 = vmul.f32 %v556, %v274
  %v689 = vmul.f32 %v559, %v274
  %v690 = vmul.f32 %v562, %v274
  %v691 = vmul.f32 %v565, %v274
  %v692 = vmul.f32 %v568, %v274
  %v693 = vmul.f32 %v571, %v274
  %v694 = vmul.f32 %v574, %v274
  %v695 = vmul.f32 %v577, %v274
  %v696 = vmul.f32 %v580, %v274
  %v697 = vmul.f32 %v583, %v274
  %v698 = vmul.f32 %v586, %v274
  %v699 = vmul.f32 %v589, %v274
  %v700 = vmul.f32 %v592, %v274
  %v701 = vmul.f32 %v595, %v274
  %v702 = vmul.f32 %v598, %v274
  %v703 = vmul.f32 %v601, %v274
  %v704 = vmul.f32 %v604, %v274
  %v705 = vmul.f32 %v607, %v274
  %v706 = vmul.f32 %v610, %v274
  %v707 = vmul.f32 %v613, %v274
  %v708 = vmul.f32 %v616, %v274
  %v709 = vmul.f32 %v619, %v274
  %v710 = vmul.f32 %v622, %v274
  %v711 = vmul.f32 %v625, %v274
  %v712 = vmul.f32 %v628, %v274
  %v713 = vmul.f32 %v631, %v274
  %v714 = vmul.f32 %v634, %v274
  %v715 = vmul.f32 %v637, %v274
  %v716 = vmul.f32 %v640, %v274
  %v717 = vmul.f32 %v643, %v274
  %v718 = vmul.f32 %v646, %v274
  %v719 = vmul.f32 %v649, %v274
  %v720 = vmul.f32 %v652, %v274
  %v721 = vmul.f32 %v655, %v274
  %v722 = vmul.f32 %v658, %v274
  %v723 = vadd.f32 %v659, 1e-05
  %v724 = vadd.f32 %v660, 1e-05
  %v725 = vadd.f32 %v661, 1e-05
  %v726 = vadd.f32 %v662, 1e-05
  %v727 = vadd.f32 %v663, 1e-05
  %v728 = vadd.f32 %v664, 1e-05
  %v729 = vadd.f32 %v665, 1e-05
  %v730 = vadd.f32 %v666, 1e-05
  %v731 = vadd.f32 %v667, 1e-05
  %v732 = vadd.f32 %v668, 1e-05
  %v733 = vadd.f32 %v669, 1e-05
  %v734 = vadd.f32 %v670, 1e-05
  %v735 = vadd.f32 %v671, 1e-05
  %v736 = vadd.f32 %v672, 1e-05
  %v737 = vadd.f32 %v673, 1e-05
  %v738 = vadd.f32 %v674, 1e-05
  %v739 = vadd.f32 %v675, 1e-05
  %v740 = vadd.f32 %v676, 1e-05
  %v741 = vadd.f32 %v677, 1e-05
  %v742 = vadd.f32 %v678, 1e-05
  %v743 = vadd.f32 %v679, 1e-05
  %v744 = vadd.f32 %v680, 1e-05
  %v745 = vadd.f32 %v681, 1e-05
  %v746 = vadd.f32 %v682, 1e-05
  %v747 = vadd.f32 %v683, 1e-05
  %v748 = vadd.f32 %v684, 1e-05
  %v749 = vadd.f32 %v685, 1e-05
  %v750 = vadd.f32 %v686, 1e-05
  %v751 = vadd.f32 %v687, 1e-05
  %v752 = vadd.f32 %v688, 1e-05
  %v753 = vadd.f32 %v689, 1e-05
  %v754 = vadd.f32 %v690, 1e-05
  %v755 = vadd.f32 %v691, 1e-05
  %v756 = vadd.f32 %v692, 1e-05
  %v757 = vadd.f32 %v693, 1e-05
  %v758 = vadd.f32 %v694, 1e-05
  %v759 = vadd.f32 %v695, 1e-05
  %v760 = vadd.f32 %v696, 1e-05
  %v761 = vadd.f32 %v697, 1e-05
  %v762 = vadd.f32 %v698, 1e-05
  %v763 = vadd.f32 %v699, 1e-05
  %v764 = vadd.f32 %v700, 1e-05
  %v765 = vadd.f32 %v701, 1e-05
  %v766 = vadd.f32 %v702, 1e-05
  %v767 = vadd.f32 %v703, 1e-05
  %v768 = vadd.f32 %v704, 1e-05
  %v769 = vadd.f32 %v705, 1e-05
  %v770 = vadd.f32 %v706, 1e-05
  %v771 = vadd.f32 %v707, 1e-05
  %v772 = vadd.f32 %v708, 1e-05
  %v773 = vadd.f32 %v709, 1e-05
  %v774 = vadd.f32 %v710, 1e-05
  %v775 = vadd.f32 %v711, 1e-05
  %v776 = vadd.f32 %v712, 1e-05
  %v777 = vadd.f32 %v713, 1e-05
  %v778 = vadd.f32 %v714, 1e-05
  %v779 = vadd.f32 %v715, 1e-05
  %v780 = vadd.f32 %v716, 1e-05
  %v781 = vadd.f32 %v717, 1e-05
  %v782 = vadd.f32 %v718, 1e-05
  %v783 = vadd.f32 %v719, 1e-05
  %v784 = vadd.f32 %v720, 1e-05
  %v785 = vadd.f32 %v721, 1e-05
  %v786 = vadd.f32 %v722, 1e-05
  %v787 = vrsqrt.pop %v723
  %v788 = vrsqrt.pop %v724
  %v789 = vrsqrt.pop %v725
  %v790 = vrsqrt.pop %v726
  %v791 = vrsqrt.pop %v727
  %v792 = vrsqrt.pop %v728
  %v793 = vrsqrt.pop %v729
  %v794 = vrsqrt.pop %v730
  %v795 = vrsqrt.pop %v731
  %v796 = vrsqrt.pop %v732
  %v797 = vrsqrt.pop %v733
  %v798 = vrsqrt.pop %v734
  %v799 = vrsqrt.pop %v735
  %v800 = vrsqrt.pop %v736
  %v801 = vrsqrt.pop %v737
  %v802 = vrsqrt.pop %v738
  %v803 = vrsqrt.pop %v739
  %v804 = vrsqrt.pop %v740
  %v805 = vrsqrt.pop %v741
  %v806 = vrsqrt.pop %v742
  %v807 = vrsqrt.pop %v743
  %v808 = vrsqrt.pop %v744
  %v809 = vrsqrt.pop %v745
  %v810 = vrsqrt.pop %v746
  %v811 = vrsqrt.pop %v747
  %v812 = vrsqrt.pop %v748
  %v813 = vrsqrt.pop %v749
  %v814 = vrsqrt.pop %v750
  %v815 = vrsqrt.pop %v751
  %v816 = vrsqrt.pop %v752
  %v817 = vrsqrt.pop %v753
  %v818 = vrsqrt.pop %v754
  %v819 = vrsqrt.pop %v755
  %v820 = vrsqrt.pop %v756
  %v821 = vrsqrt.pop %v757
  %v822 = vrsqrt.pop %v758
  %v823 = vrsqrt.pop %v759
  %v824 = vrsqrt.pop %v760
  %v825 = vrsqrt.pop %v761
  %v826 = vrsqrt.pop %v762
  %v827 = vrsqrt.pop %v763
  %v828 = vrsqrt.pop %v764
  %v829 = vrsqrt.pop %v765
  %v830 = vrsqrt.pop %v766
  %v831 = vrsqrt.pop %v767
  %v832 = vrsqrt.pop %v768
  %v833 = vrsqrt.pop %v769
  %v834 = vrsqrt.pop %v770
  %v835 = vrsqrt.pop %v771
  %v836 = vrsqrt.pop %v772
  %v837 = vrsqrt.pop %v773
  %v838 = vrsqrt.pop %v774
  %v839 = vrsqrt.pop %v775
  %v840 = vrsqrt.pop %v776
  %v841 = vrsqrt.pop %v777
  %v842 = vrsqrt.pop %v778
  %v843 = vrsqrt.pop %v779
  %v844 = vrsqrt.pop %v780
  %v845 = vrsqrt.pop %v781
  %v846 = vrsqrt.pop %v782
  %v847 = vrsqrt.pop %v783
  %v848 = vrsqrt.pop %v784
  %v849 = vrsqrt.pop %v785
  %v850 = vrsqrt.pop %v786
  %v851 = vmul.f32 %v339, %v787
  %v852 = vmul.f32 %v340, %v788
  %v853 = vmul.f32 %v341, %v789
  %v854 = vmul.f32 %v342, %v790
  %v855 = vmul.f32 %v343, %v791
  %v856 = vmul.f32 %v344, %v792
  %v857 = vmul.f32 %v345, %v793
  %v858 = vmul.f32 %v346, %v794
  %v859 = vmul.f32 %v347, %v795
  %v860 = vmul.f32 %v348, %v796
  %v861 = vmul.f32 %v349, %v797
  %v862 = vmul.f32 %v350, %v798
  %v863 = vmul.f32 %v351, %v799
  %v864 = vmul.f32 %v352, %v800
  %v865 = vmul.f32 %v353, %v801
  %v866 = vmul.f32 %v354, %v802
  %v867 = vmul.f32 %v355, %v803
  %v868 = vmul.f32 %v356, %v804
  %v869 = vmul.f32 %v357, %v805
  %v870 = vmul.f32 %v358, %v806
  %v871 = vmul.f32 %v359, %v807
  %v872 = vmul.f32 %v360, %v808
  %v873 = vmul.f32 %v361, %v809
  %v874 = vmul.f32 %v362, %v810
  %v875 = vmul.f32 %v363, %v811
  %v876 = vmul.f32 %v364, %v812
  %v877 = vmul.f32 %v365, %v813
  %v878 = vmul.f32 %v366, %v814
  %v879 = vmul.f32 %v367, %v815
  %v880 = vmul.f32 %v368, %v816
  %v881 = vmul.f32 %v369, %v817
  %v882 = vmul.f32 %v370, %v818
  %v883 = vmul.f32 %v371, %v819
  %v884 = vmul.f32 %v372, %v820
  %v885 = vmul.f32 %v373, %v821
  %v886 = vmul.f32 %v374, %v822
  %v887 = vmul.f32 %v375, %v823
  %v888 = vmul.f32 %v376, %v824
  %v889 = vmul.f32 %v377, %v825
  %v890 = vmul.f32 %v378, %v826
  %v891 = vmul.f32 %v379, %v827
  %v892 = vmul.f32 %v380, %v828
  %v893 = vmul.f32 %v381, %v829
  %v894 = vmul.f32 %v382, %v830
  %v895 = vmul.f32 %v383, %v831
  %v896 = vmul.f32 %v384, %v832
  %v897 = vmul.f32 %v385, %v833
  %v898 = vmul.f32 %v386, %v834
  %v899 = vmul.f32 %v387, %v835
  %v900 = vmul.f32 %v388, %v836
  %v901 = vmul.f32 %v389, %v837
  %v902 = vmul.f32 %v390, %v838
  %v903 = vmul.f32 %v391, %v839
  %v904 = vmul.f32 %v392, %v840
  %v905 = vmul.f32 %v393, %v841
  %v906 = vmul.f32 %v394, %v842
  %v907 = vmul.f32 %v395, %v843
  %v908 = vmul.f32 %v396, %v844
  %v909 = vmul.f32 %v397, %v845
  %v910 = vmul.f32 %v398, %v846
  %v911 = vmul.f32 %v399, %v847
  %v912 = vmul.f32 %v400, %v848
  %v913 = vmul.f32 %v401, %v849
  %v914 = vmul.f32 %v402, %v850
  %v915 = vld [vmem:[%s1] sm:$0x1]
  %v917 = vlaneseq
  %v918 = vshrl.u32 %v917, 7
  %v919 = vsub.s32 0, %v918
  %v920 = vrot.slane %v915, %v919
  %v922 = vmul.f32 %v851, %v920
  %v923 = vmul.f32 %v852, %v920
  %v924 = vmul.f32 %v853, %v920
  %v925 = vmul.f32 %v854, %v920
  %v926 = vmul.f32 %v855, %v920
  %v927 = vmul.f32 %v856, %v920
  %v928 = vmul.f32 %v857, %v920
  %v929 = vmul.f32 %v858, %v920
  %v930 = vmul.f32 %v859, %v920
  %v931 = vmul.f32 %v860, %v920
  %v932 = vmul.f32 %v861, %v920
  %v933 = vmul.f32 %v862, %v920
  %v934 = vmul.f32 %v863, %v920
  %v935 = vmul.f32 %v864, %v920
  %v936 = vmul.f32 %v865, %v920
  %v937 = vmul.f32 %v866, %v920
  %v938 = vmul.f32 %v867, %v920
  %v939 = vmul.f32 %v868, %v920
  %v940 = vmul.f32 %v869, %v920
  %v941 = vmul.f32 %v870, %v920
  %v942 = vmul.f32 %v871, %v920
  %v943 = vmul.f32 %v872, %v920
  %v944 = vmul.f32 %v873, %v920
  %v945 = vmul.f32 %v874, %v920
  %v946 = vmul.f32 %v875, %v920
  %v947 = vmul.f32 %v876, %v920
  %v948 = vmul.f32 %v877, %v920
  %v949 = vmul.f32 %v878, %v920
  %v950 = vmul.f32 %v879, %v920
  %v951 = vmul.f32 %v880, %v920
  %v952 = vmul.f32 %v881, %v920
  %v953 = vmul.f32 %v882, %v920
  %v954 = vmul.f32 %v883, %v920
  %v955 = vmul.f32 %v884, %v920
  %v956 = vmul.f32 %v885, %v920
  %v957 = vmul.f32 %v886, %v920
  %v958 = vmul.f32 %v887, %v920
  %v959 = vmul.f32 %v888, %v920
  %v960 = vmul.f32 %v889, %v920
  %v961 = vmul.f32 %v890, %v920
  %v962 = vmul.f32 %v891, %v920
  %v963 = vmul.f32 %v892, %v920
  %v964 = vmul.f32 %v893, %v920
  %v965 = vmul.f32 %v894, %v920
  %v966 = vmul.f32 %v895, %v920
  %v967 = vmul.f32 %v896, %v920
  %v968 = vmul.f32 %v897, %v920
  %v969 = vmul.f32 %v898, %v920
  %v970 = vmul.f32 %v899, %v920
  %v971 = vmul.f32 %v900, %v920
  %v972 = vmul.f32 %v901, %v920
  %v973 = vmul.f32 %v902, %v920
  %v974 = vmul.f32 %v903, %v920
  %v975 = vmul.f32 %v904, %v920
  %v976 = vmul.f32 %v905, %v920
  %v977 = vmul.f32 %v906, %v920
  %v978 = vmul.f32 %v907, %v920
  %v979 = vmul.f32 %v908, %v920
  %v980 = vmul.f32 %v909, %v920
  %v981 = vmul.f32 %v910, %v920
  %v982 = vmul.f32 %v911, %v920
  %v983 = vmul.f32 %v912, %v920
  %v984 = vmul.f32 %v913, %v920
  %v985 = vmul.f32 %v914, %v920
  %v986 = vld [vmem:[%s2] sm:$0x1]
  %v988 = vlaneseq
  %v989 = vshrl.u32 %v988, 7
  %v990 = vsub.s32 0, %v989
  %v991 = vrot.slane %v986, %v990
  %v993 = vadd.f32 %v922, %v991
  %v994 = vadd.f32 %v923, %v991
  %v995 = vadd.f32 %v924, %v991
  %v996 = vadd.f32 %v925, %v991
  %v997 = vadd.f32 %v926, %v991
  %v998 = vadd.f32 %v927, %v991
  %v999 = vadd.f32 %v928, %v991
  %v1000 = vadd.f32 %v929, %v991
  %v1001 = vadd.f32 %v930, %v991
  %v1002 = vadd.f32 %v931, %v991
  %v1003 = vadd.f32 %v932, %v991
  %v1004 = vadd.f32 %v933, %v991
  %v1005 = vadd.f32 %v934, %v991
  %v1006 = vadd.f32 %v935, %v991
  %v1007 = vadd.f32 %v936, %v991
  %v1008 = vadd.f32 %v937, %v991
  %v1009 = vadd.f32 %v938, %v991
  %v1010 = vadd.f32 %v939, %v991
  %v1011 = vadd.f32 %v940, %v991
  %v1012 = vadd.f32 %v941, %v991
  %v1013 = vadd.f32 %v942, %v991
  %v1014 = vadd.f32 %v943, %v991
  %v1015 = vadd.f32 %v944, %v991
  %v1016 = vadd.f32 %v945, %v991
  %v1017 = vadd.f32 %v946, %v991
  %v1018 = vadd.f32 %v947, %v991
  %v1019 = vadd.f32 %v948, %v991
  %v1020 = vadd.f32 %v949, %v991
  %v1021 = vadd.f32 %v950, %v991
  %v1022 = vadd.f32 %v951, %v991
  %v1023 = vadd.f32 %v952, %v991
  %v1024 = vadd.f32 %v953, %v991
  %v1025 = vadd.f32 %v954, %v991
  %v1026 = vadd.f32 %v955, %v991
  %v1027 = vadd.f32 %v956, %v991
  %v1028 = vadd.f32 %v957, %v991
  %v1029 = vadd.f32 %v958, %v991
  %v1030 = vadd.f32 %v959, %v991
  %v1031 = vadd.f32 %v960, %v991
  %v1032 = vadd.f32 %v961, %v991
  %v1033 = vadd.f32 %v962, %v991
  %v1034 = vadd.f32 %v963, %v991
  %v1035 = vadd.f32 %v964, %v991
  %v1036 = vadd.f32 %v965, %v991
  %v1037 = vadd.f32 %v966, %v991
  %v1038 = vadd.f32 %v967, %v991
  %v1039 = vadd.f32 %v968, %v991
  %v1040 = vadd.f32 %v969, %v991
  %v1041 = vadd.f32 %v970, %v991
  %v1042 = vadd.f32 %v971, %v991
  %v1043 = vadd.f32 %v972, %v991
  %v1044 = vadd.f32 %v973, %v991
  %v1045 = vadd.f32 %v974, %v991
  %v1046 = vadd.f32 %v975, %v991
  %v1047 = vadd.f32 %v976, %v991
  %v1048 = vadd.f32 %v977, %v991
  %v1049 = vadd.f32 %v978, %v991
  %v1050 = vadd.f32 %v979, %v991
  %v1051 = vadd.f32 %v980, %v991
  %v1052 = vadd.f32 %v981, %v991
  %v1053 = vadd.f32 %v982, %v991
  %v1054 = vadd.f32 %v983, %v991
  %v1055 = vadd.f32 %v984, %v991
  %v1056 = vadd.f32 %v985, %v991
  %v1057 = vld [vmem:[%s3] sm:$0xff]
  %v1058 = vld [vmem:[%s3 + $0x8] sm:$0xff]
  %v1059 = vld [vmem:[%s3 + $0x10] sm:$0xff]
  %v1060 = vld [vmem:[%s3 + $0x18] sm:$0xff]
  %v1062 = vsel %vm81, %v993, 0
  %v1065 = vsel %vm81, %v994, 0
  %v1068 = vsel %vm81, %v995, 0
  %v1071 = vsel %vm81, %v996, 0
  %v1074 = vsel %vm81, %v997, 0
  %v1077 = vsel %vm81, %v998, 0
  %v1080 = vsel %vm81, %v999, 0
  %v1083 = vsel %vm81, %v1000, 0
  %v1086 = vsel %vm81, %v1001, 0
  %v1089 = vsel %vm81, %v1002, 0
  %v1092 = vsel %vm81, %v1003, 0
  %v1095 = vsel %vm81, %v1004, 0
  %v1098 = vsel %vm81, %v1005, 0
  %v1101 = vsel %vm81, %v1006, 0
  %v1104 = vsel %vm81, %v1007, 0
  %v1107 = vsel %vm81, %v1008, 0
  %v1110 = vsel %vm81, %v1009, 0
  %v1113 = vsel %vm81, %v1010, 0
  %v1116 = vsel %vm81, %v1011, 0
  %v1119 = vsel %vm81, %v1012, 0
  %v1122 = vsel %vm81, %v1013, 0
  %v1125 = vsel %vm81, %v1014, 0
  %v1128 = vsel %vm81, %v1015, 0
  %v1131 = vsel %vm81, %v1016, 0
  %v1134 = vsel %vm81, %v1017, 0
  %v1137 = vsel %vm81, %v1018, 0
  %v1140 = vsel %vm81, %v1019, 0
  %v1143 = vsel %vm81, %v1020, 0
  %v1146 = vsel %vm81, %v1021, 0
  %v1149 = vsel %vm81, %v1022, 0
  %v1152 = vsel %vm81, %v1023, 0
  %v1155 = vsel %vm81, %v1024, 0
  %v1158 = vsel %vm81, %v1025, 0
  %v1161 = vsel %vm81, %v1026, 0
  %v1164 = vsel %vm81, %v1027, 0
  %v1167 = vsel %vm81, %v1028, 0
  %v1170 = vsel %vm81, %v1029, 0
  %v1173 = vsel %vm81, %v1030, 0
  %v1176 = vsel %vm81, %v1031, 0
  %v1179 = vsel %vm81, %v1032, 0
  %v1182 = vsel %vm81, %v1033, 0
  %v1185 = vsel %vm81, %v1034, 0
  %v1188 = vsel %vm81, %v1035, 0
  %v1191 = vsel %vm81, %v1036, 0
  %v1194 = vsel %vm81, %v1037, 0
  %v1197 = vsel %vm81, %v1038, 0
  %v1200 = vsel %vm81, %v1039, 0
  %v1203 = vsel %vm81, %v1040, 0
  %v1206 = vsel %vm81, %v1041, 0
  %v1209 = vsel %vm81, %v1042, 0
  %v1212 = vsel %vm81, %v1043, 0
  %v1215 = vsel %vm81, %v1044, 0
  %v1218 = vsel %vm81, %v1045, 0
  %v1221 = vsel %vm81, %v1046, 0
  %v1224 = vsel %vm81, %v1047, 0
  %v1227 = vsel %vm81, %v1048, 0
  %v1230 = vsel %vm81, %v1049, 0
  %v1233 = vsel %vm81, %v1050, 0
  %v1236 = vsel %vm81, %v1051, 0
  %v1239 = vsel %vm81, %v1052, 0
  %v1242 = vsel %vm81, %v1053, 0
  %v1245 = vsel %vm81, %v1054, 0
  %v1248 = vsel %vm81, %v1055, 0
  %v1251 = vsel %vm81, %v1056, 0
  %1253 = vmatprep.subr.mxu0 0.0
  %1254 = vmatpush1.msra.mxu0 %v1057
  %1255 = vmatprep.subr.mxu0 0.0
  %1256 = vmatpush1.msra.mxu0 %v1058
  %1257 = vmatprep.subr.mxu0 0.0
  %1258 = vmatpush1.msra.mxu0 %v1059
  %1259 = vmatprep.subr.mxu0 0.0
  %1260 = vmatpush1.msra.mxu0 %v1060
  %1261 = vmatprep.subr.mxu0 0.0
  %1262 = vmatpush1.msra.mxu0 0.0
  %1263 = vmatprep.subr.mxu0 0.0
  %1264 = vmatpush1.msra.mxu0 0.0
  %1265 = vmatprep.subr.mxu0 0.0
  %1266 = vmatpush1.msra.mxu0 0.0
  %1267 = vmatprep.subr.mxu0 0.0
  %1268 = vmatpush1.msra.mxu0 0.0
  %1269 = vmatprep.subr.mxu0 0.0
  %1270 = vmatpush1.msra.mxu0 0.0
  %1271 = vmatprep.subr.mxu0 0.0
  %1272 = vmatpush1.msra.mxu0 0.0
  %1273 = vmatprep.subr.mxu0 0.0
  %1274 = vmatpush1.msra.mxu0 0.0
  %1275 = vmatprep.subr.mxu0 0.0
  %1276 = vmatpush1.msra.mxu0 0.0
  %1277 = vmatprep.subr.mxu0 0.0
  %1278 = vmatpush1.msra.mxu0 0.0
  %1279 = vmatprep.subr.mxu0 0.0
  %1280 = vmatpush1.msra.mxu0 0.0
  %1281 = vmatprep.subr.mxu0 0.0
  %1282 = vmatpush1.msra.mxu0 0.0
  %1283 = vmatprep.subr.mxu0 0.0
  %1284 = vmatpush1.msra.mxu0 0.0
  %1285 = vmatprep.subr.mxu0 0.0
  %1286 = vmatpush1.msra.mxu0 0.0
  %1287 = vmatprep.subr.mxu0 0.0
  %1288 = vmatpush1.msra.mxu0 0.0
  %1289 = vmatprep.subr.mxu0 0.0
  %1290 = vmatpush1.msra.mxu0 0.0
  %1291 = vmatprep.subr.mxu0 0.0
  %1292 = vmatpush1.msra.mxu0 0.0
  %1293 = vmatprep.subr.mxu0 0.0
  %1294 = vmatpush1.msra.mxu0 0.0
  %1295 = vmatprep.subr.mxu0 0.0
  %1296 = vmatpush1.msra.mxu0 0.0
  %1297 = vmatprep.subr.mxu0 0.0
  %1298 = vmatpush1.msra.mxu0 0.0
  %1299 = vmatprep.subr.mxu0 0.0
  %1300 = vmatpush1.msra.mxu0 0.0
  %1301 = vmatprep.subr.mxu0 0.0
  %1302 = vmatpush1.msra.mxu0 0.0
  %1303 = vmatprep.subr.mxu0 0.0
  %1304 = vmatpush1.msra.mxu0 0.0
  %1305 = vmatprep.subr.mxu0 0.0
  %1306 = vmatpush1.msra.mxu0 0.0
  %1307 = vmatprep.subr.mxu0 0.0
  %1308 = vmatpush1.msra.mxu0 0.0
  %1309 = vmatprep.subr.mxu0 0.0
  %1310 = vmatpush1.msra.mxu0 0.0
  %1311 = vmatprep.subr.mxu0 0.0
  %1312 = vmatpush1.msra.mxu0 0.0
  %1313 = vmatprep.subr.mxu0 0.0
  %1314 = vmatpush1.msra.mxu0 0.0
  %1315 = vmatprep.subr.mxu0 0.0
  %1316 = vmatpush1.msra.mxu0 0.0
  %1317 = vmatprep.mubr.f32.mxu0 0.0
  %1318 = vmatmul.mubr.f32.gmra.mrb[0].mxu0 %v1062
  %v1319 = vpop.f32.mrb[0].mxu0
  %v1320 = vadd.f32 0.0, %v1319
  %v1321 = vpop.f32.mrb[0].mxu0
  %1322 = vmatprep.mubr.f32.mxu0 0.0
  %1323 = vmatmul.mubr.f32.gmra.mrb[0].mxu0 %v1065
  %v1324 = vpop.f32.mrb[0].mxu0
  %v1325 = vadd.f32 0.0, %v1324
  %v1326 = vpop.f32.mrb[0].mxu0
  %1327 = vmatprep.mubr.f32.mxu0 0.0
  %1328 = vmatmul.mubr.f32.gmra.mrb[0].mxu0 %v1068
  %v1329 = vpop.f32.mrb[0].mxu0
  %v1330 = vadd.f32 0.0, %v1329
  %v1331 = vpop.f32.mrb[0].mxu0
  %1332 = vmatprep.mubr.f32.mxu0 0.0
  %1333 = vmatmul.mubr.f32.gmra.mrb[0].mxu0 %v1071
  %v1334 = vpop.f32.mrb[0].mxu0
  %v1335 = vadd.f32 0.0, %v1334
  %v1336 = vpop.f32.mrb[0].mxu0
  %1337 = vmatprep.mubr.f32.mxu0 0.0
  %1338 = vmatmul.mubr.f32.gmra.mrb[0].mxu0 %v1074
  %v1339 = vpop.f32.mrb[0].mxu0
  %v1340 = vadd.f32 0.0, %v1339
  %v1341 = vpop.f32.mrb[0].mxu0
  %1342 = vmatprep.mubr.f32.mxu0 0.0
  %1343 = vmatmul.mubr.f32.gmra.mrb[0].mxu0 %v1077
  %v1344 = vpop.f32.mrb[0].mxu0
  %v1345 = vadd.f32 0.0, %v1344
  %v1346 = vpop.f32.mrb[0].mxu0
  %1347 = vmatprep.mubr.f32.mxu0 0.0
  %1348 = vmatmul.mubr.f32.gmra.mrb[0].mxu0 %v1080
  %v1349 = vpop.f32.mrb[0].mxu0
  %v1350 = vadd.f32 0.0, %v1349
  %v1351 = vpop.f32.mrb[0].mxu0
  %1352 = vmatprep.mubr.f32.mxu0 0.0
  %1353 = vmatmul.mubr.f32.gmra.mrb[0].mxu0 %v1083
  %v1354 = vpop.f32.mrb[0].mxu0
  %v1355 = vadd.f32 0.0, %v1354
  %v1356 = vpop.f32.mrb[0].mxu0
  %1357 = vmatprep.mubr.f32.mxu0 0.0
  %1358 = vmatmul.mubr.f32.gmra.mrb[0].mxu0 %v1086
  %v1359 = vpop.f32.mrb[0].mxu0
  %v1360 = vadd.f32 0.0, %v1359
  %v1361 = vpop.f32.mrb[0].mxu0
  %1362 = vmatprep.mubr.f32.mxu0 0.0
  %1363 = vmatmul.mubr.f32.gmra.mrb[0].mxu0 %v1089
  %v1364 = vpop.f32.mrb[0].mxu0
  %v1365 = vadd.f32 0.0, %v1364
  %v1366 = vpop.f32.mrb[0].mxu0
  %1367 = vmatprep.mubr.f32.mxu0 0.0
  %1368 = vmatmul.mubr.f32.gmra.mrb[0].mxu0 %v1092
  %v1369 = vpop.f32.mrb[0].mxu0
  %v1370 = vadd.f32 0.0, %v1369
  %v1371 = vpop.f32.mrb[0].mxu0
  %1372 = vmatprep.mubr.f32.mxu0 0.0
  %1373 = vmatmul.mubr.f32.gmra.mrb[0].mxu0 %v1095
  %v1374 = vpop.f32.mrb[0].mxu0
  %v1375 = vadd.f32 0.0, %v1374
  %v1376 = vpop.f32.mrb[0].mxu0
  %1377 = vmatprep.mubr.f32.mxu0 0.0
  %1378 = vmatmul.mubr.f32.gmra.mrb[0].mxu0 %v1098
  %v1379 = vpop.f32.mrb[0].mxu0
  %v1380 = vadd.f32 0.0, %v1379
  %v1381 = vpop.f32.mrb[0].mxu0
  %1382 = vmatprep.mubr.f32.mxu0 0.0
  %1383 = vmatmul.mubr.f32.gmra.mrb[0].mxu0 %v1101
  %v1384 = vpop.f32.mrb[0].mxu0
  %v1385 = vadd.f32 0.0, %v1384
  %v1386 = vpop.f32.mrb[0].mxu0
  %1387 = vmatprep.mubr.f32.mxu0 0.0
  %1388 = vmatmul.mubr.f32.gmra.mrb[0].mxu0 %v1104
  %v1389 = vpop.f32.mrb[0].mxu0
  %v1390 = vadd.f32 0.0, %v1389
  %v1391 = vpop.f32.mrb[0].mxu0
  %1392 = vmatprep.mubr.f32.mxu0 0.0
  %1393 = vmatmul.mubr.f32.gmra.mrb[0].mxu0 %v1107
  %v1394 = vpop.f32.mrb[0].mxu0
  %v1395 = vadd.f32 0.0, %v1394
  %v1396 = vpop.f32.mrb[0].mxu0
  %1397 = vmatprep.mubr.f32.mxu0 0.0
  %1398 = vmatmul.mubr.f32.gmra.mrb[0].mxu0 %v1110
  %v1399 = vpop.f32.mrb[0].mxu0
  %v1400 = vadd.f32 0.0, %v1399
  %v1401 = vpop.f32.mrb[0].mxu0
  %1402 = vmatprep.mubr.f32.mxu0 0.0
  %1403 = vmatmul.mubr.f32.gmra.mrb[0].mxu0 %v1113
  %v1404 = vpop.f32.mrb[0].mxu0
  %v1405 = vadd.f32 0.0, %v1404
  %v1406 = vpop.f32.mrb[0].mxu0
  %1407 = vmatprep.mubr.f32.mxu0 0.0
  %1408 = vmatmul.mubr.f32.gmra.mrb[0].mxu0 %v1116
  %v1409 = vpop.f32.mrb[0].mxu0
  %v1410 = vadd.f32 0.0, %v1409
  %v1411 = vpop.f32.mrb[0].mxu0
  %1412 = vmatprep.mubr.f32.mxu0 0.0
  %1413 = vmatmul.mubr.f32.gmra.mrb[0].mxu0 %v1119
  %v1414 = vpop.f32.mrb[0].mxu0
  %v1415 = vadd.f32 0.0, %v1414
  %v1416 = vpop.f32.mrb[0].mxu0
  %1417 = vmatprep.mubr.f32.mxu0 0.0
  %1418 = vmatmul.mubr.f32.gmra.mrb[0].mxu0 %v1122
  %v1419 = vpop.f32.mrb[0].mxu0
  %v1420 = vadd.f32 0.0, %v1419
  %v1421 = vpop.f32.mrb[0].mxu0
  %1422 = vmatprep.mubr.f32.mxu0 0.0
  %1423 = vmatmul.mubr.f32.gmra.mrb[0].mxu0 %v1125
  %v1424 = vpop.f32.mrb[0].mxu0
  %v1425 = vadd.f32 0.0, %v1424
  %v1426 = vpop.f32.mrb[0].mxu0
  %1427 = vmatprep.mubr.f32.mxu0 0.0
  %1428 = vmatmul.mubr.f32.gmra.mrb[0].mxu0 %v1128
  %v1429 = vpop.f32.mrb[0].mxu0
  %v1430 = vadd.f32 0.0, %v1429
  %v1431 = vpop.f32.mrb[0].mxu0
  %1432 = vmatprep.mubr.f32.mxu0 0.0
  %1433 = vmatmul.mubr.f32.gmra.mrb[0].mxu0 %v1131
  %v1434 = vpop.f32.mrb[0].mxu0
  %v1435 = vadd.f32 0.0, %v1434
  %v1436 = vpop.f32.mrb[0].mxu0
  %1437 = vmatprep.mubr.f32.mxu0 0.0
  %1438 = vmatmul.mubr.f32.gmra.mrb[0].mxu0 %v1134
  %v1439 = vpop.f32.mrb[0].mxu0
  %v1440 = vadd.f32 0.0, %v1439
  %v1441 = vpop.f32.mrb[0].mxu0
  %1442 = vmatprep.mubr.f32.mxu0 0.0
  %1443 = vmatmul.mubr.f32.gmra.mrb[0].mxu0 %v1137
  %v1444 = vpop.f32.mrb[0].mxu0
  %v1445 = vadd.f32 0.0, %v1444
  %v1446 = vpop.f32.mrb[0].mxu0
  %1447 = vmatprep.mubr.f32.mxu0 0.0
  %1448 = vmatmul.mubr.f32.gmra.mrb[0].mxu0 %v1140
  %v1449 = vpop.f32.mrb[0].mxu0
  %v1450 = vadd.f32 0.0, %v1449
  %v1451 = vpop.f32.mrb[0].mxu0
  %1452 = vmatprep.mubr.f32.mxu0 0.0
  %1453 = vmatmul.mubr.f32.gmra.mrb[0].mxu0 %v1143
  %v1454 = vpop.f32.mrb[0].mxu0
  %v1455 = vadd.f32 0.0, %v1454
  %v1456 = vpop.f32.mrb[0].mxu0
  %1457 = vmatprep.mubr.f32.mxu0 0.0
  %1458 = vmatmul.mubr.f32.gmra.mrb[0].mxu0 %v1146
  %v1459 = vpop.f32.mrb[0].mxu0
  %v1460 = vadd.f32 0.0, %v1459
  %v1461 = vpop.f32.mrb[0].mxu0
  %1462 = vmatprep.mubr.f32.mxu0 0.0
  %1463 = vmatmul.mubr.f32.gmra.mrb[0].mxu0 %v1149
  %v1464 = vpop.f32.mrb[0].mxu0
  %v1465 = vadd.f32 0.0, %v1464
  %v1466 = vpop.f32.mrb[0].mxu0
  %1467 = vmatprep.mubr.f32.mxu0 0.0
  %1468 = vmatmul.mubr.f32.gmra.mrb[0].mxu0 %v1152
  %v1469 = vpop.f32.mrb[0].mxu0
  %v1470 = vadd.f32 0.0, %v1469
  %v1471 = vpop.f32.mrb[0].mxu0
  %1472 = vmatprep.mubr.f32.mxu0 0.0
  %1473 = vmatmul.mubr.f32.gmra.mrb[0].mxu0 %v1155
  %v1474 = vpop.f32.mrb[0].mxu0
  %v1475 = vadd.f32 0.0, %v1474
  %v1476 = vpop.f32.mrb[0].mxu0
  %1477 = vmatprep.mubr.f32.mxu0 0.0
  %1478 = vmatmul.mubr.f32.gmra.mrb[0].mxu0 %v1158
  %v1479 = vpop.f32.mrb[0].mxu0
  %v1480 = vadd.f32 0.0, %v1479
  %v1481 = vpop.f32.mrb[0].mxu0
  %1482 = vmatprep.mubr.f32.mxu0 0.0
  %1483 = vmatmul.mubr.f32.gmra.mrb[0].mxu0 %v1161
  %v1484 = vpop.f32.mrb[0].mxu0
  %v1485 = vadd.f32 0.0, %v1484
  %v1486 = vpop.f32.mrb[0].mxu0
  %1487 = vmatprep.mubr.f32.mxu0 0.0
  %1488 = vmatmul.mubr.f32.gmra.mrb[0].mxu0 %v1164
  %v1489 = vpop.f32.mrb[0].mxu0
  %v1490 = vadd.f32 0.0, %v1489
  %v1491 = vpop.f32.mrb[0].mxu0
  %1492 = vmatprep.mubr.f32.mxu0 0.0
  %1493 = vmatmul.mubr.f32.gmra.mrb[0].mxu0 %v1167
  %v1494 = vpop.f32.mrb[0].mxu0
  %v1495 = vadd.f32 0.0, %v1494
  %v1496 = vpop.f32.mrb[0].mxu0
  %1497 = vmatprep.mubr.f32.mxu0 0.0
  %1498 = vmatmul.mubr.f32.gmra.mrb[0].mxu0 %v1170
  %v1499 = vpop.f32.mrb[0].mxu0
  %v1500 = vadd.f32 0.0, %v1499
  %v1501 = vpop.f32.mrb[0].mxu0
  %1502 = vmatprep.mubr.f32.mxu0 0.0
  %1503 = vmatmul.mubr.f32.gmra.mrb[0].mxu0 %v1173
  %v1504 = vpop.f32.mrb[0].mxu0
  %v1505 = vadd.f32 0.0, %v1504
  %v1506 = vpop.f32.mrb[0].mxu0
  %1507 = vmatprep.mubr.f32.mxu0 0.0
  %1508 = vmatmul.mubr.f32.gmra.mrb[0].mxu0 %v1176
  %v1509 = vpop.f32.mrb[0].mxu0
  %v1510 = vadd.f32 0.0, %v1509
  %v1511 = vpop.f32.mrb[0].mxu0
  %1512 = vmatprep.mubr.f32.mxu0 0.0
  %1513 = vmatmul.mubr.f32.gmra.mrb[0].mxu0 %v1179
  %v1514 = vpop.f32.mrb[0].mxu0
  %v1515 = vadd.f32 0.0, %v1514
  %v1516 = vpop.f32.mrb[0].mxu0
  %1517 = vmatprep.mubr.f32.mxu0 0.0
  %1518 = vmatmul.mubr.f32.gmra.mrb[0].mxu0 %v1182
  %v1519 = vpop.f32.mrb[0].mxu0
  %v1520 = vadd.f32 0.0, %v1519
  %v1521 = vpop.f32.mrb[0].mxu0
  %1522 = vmatprep.mubr.f32.mxu0 0.0
  %1523 = vmatmul.mubr.f32.gmra.mrb[0].mxu0 %v1185
  %v1524 = vpop.f32.mrb[0].mxu0
  %v1525 = vadd.f32 0.0, %v1524
  %v1526 = vpop.f32.mrb[0].mxu0
  %1527 = vmatprep.mubr.f32.mxu0 0.0
  %1528 = vmatmul.mubr.f32.gmra.mrb[0].mxu0 %v1188
  %v1529 = vpop.f32.mrb[0].mxu0
  %v1530 = vadd.f32 0.0, %v1529
  %v1531 = vpop.f32.mrb[0].mxu0
  %1532 = vmatprep.mubr.f32.mxu0 0.0
  %1533 = vmatmul.mubr.f32.gmra.mrb[0].mxu0 %v1191
  %v1534 = vpop.f32.mrb[0].mxu0
  %v1535 = vadd.f32 0.0, %v1534
  %v1536 = vpop.f32.mrb[0].mxu0
  %1537 = vmatprep.mubr.f32.mxu0 0.0
  %1538 = vmatmul.mubr.f32.gmra.mrb[0].mxu0 %v1194
  %v1539 = vpop.f32.mrb[0].mxu0
  %v1540 = vadd.f32 0.0, %v1539
  %v1541 = vpop.f32.mrb[0].mxu0
  %1542 = vmatprep.mubr.f32.mxu0 0.0
  %1543 = vmatmul.mubr.f32.gmra.mrb[0].mxu0 %v1197
  %v1544 = vpop.f32.mrb[0].mxu0
  %v1545 = vadd.f32 0.0, %v1544
  %v1546 = vpop.f32.mrb[0].mxu0
  %1547 = vmatprep.mubr.f32.mxu0 0.0
  %1548 = vmatmul.mubr.f32.gmra.mrb[0].mxu0 %v1200
  %v1549 = vpop.f32.mrb[0].mxu0
  %v1550 = vadd.f32 0.0, %v1549
  %v1551 = vpop.f32.mrb[0].mxu0
  %1552 = vmatprep.mubr.f32.mxu0 0.0
  %1553 = vmatmul.mubr.f32.gmra.mrb[0].mxu0 %v1203
  %v1554 = vpop.f32.mrb[0].mxu0
  %v1555 = vadd.f32 0.0, %v1554
  %v1556 = vpop.f32.mrb[0].mxu0
  %1557 = vmatprep.mubr.f32.mxu0 0.0
  %1558 = vmatmul.mubr.f32.gmra.mrb[0].mxu0 %v1206
  %v1559 = vpop.f32.mrb[0].mxu0
  %v1560 = vadd.f32 0.0, %v1559
  %v1561 = vpop.f32.mrb[0].mxu0
  %1562 = vmatprep.mubr.f32.mxu0 0.0
  %1563 = vmatmul.mubr.f32.gmra.mrb[0].mxu0 %v1209
  %v1564 = vpop.f32.mrb[0].mxu0
  %v1565 = vadd.f32 0.0, %v1564
  %v1566 = vpop.f32.mrb[0].mxu0
  %1567 = vmatprep.mubr.f32.mxu0 0.0
  %1568 = vmatmul.mubr.f32.gmra.mrb[0].mxu0 %v1212
  %v1569 = vpop.f32.mrb[0].mxu0
  %v1570 = vadd.f32 0.0, %v1569
  %v1571 = vpop.f32.mrb[0].mxu0
  %1572 = vmatprep.mubr.f32.mxu0 0.0
  %1573 = vmatmul.mubr.f32.gmra.mrb[0].mxu0 %v1215
  %v1574 = vpop.f32.mrb[0].mxu0
  %v1575 = vadd.f32 0.0, %v1574
  %v1576 = vpop.f32.mrb[0].mxu0
  %1577 = vmatprep.mubr.f32.mxu0 0.0
  %1578 = vmatmul.mubr.f32.gmra.mrb[0].mxu0 %v1218
  %v1579 = vpop.f32.mrb[0].mxu0
  %v1580 = vadd.f32 0.0, %v1579
  %v1581 = vpop.f32.mrb[0].mxu0
  %1582 = vmatprep.mubr.f32.mxu0 0.0
  %1583 = vmatmul.mubr.f32.gmra.mrb[0].mxu0 %v1221
  %v1584 = vpop.f32.mrb[0].mxu0
  %v1585 = vadd.f32 0.0, %v1584
  %v1586 = vpop.f32.mrb[0].mxu0
  %1587 = vmatprep.mubr.f32.mxu0 0.0
  %1588 = vmatmul.mubr.f32.gmra.mrb[0].mxu0 %v1224
  %v1589 = vpop.f32.mrb[0].mxu0
  %v1590 = vadd.f32 0.0, %v1589
  %v1591 = vpop.f32.mrb[0].mxu0
  %1592 = vmatprep.mubr.f32.mxu0 0.0
  %1593 = vmatmul.mubr.f32.gmra.mrb[0].mxu0 %v1227
  %v1594 = vpop.f32.mrb[0].mxu0
  %v1595 = vadd.f32 0.0, %v1594
  %v1596 = vpop.f32.mrb[0].mxu0
  %1597 = vmatprep.mubr.f32.mxu0 0.0
  %1598 = vmatmul.mubr.f32.gmra.mrb[0].mxu0 %v1230
  %v1599 = vpop.f32.mrb[0].mxu0
  %v1600 = vadd.f32 0.0, %v1599
  %v1601 = vpop.f32.mrb[0].mxu0
  %1602 = vmatprep.mubr.f32.mxu0 0.0
  %1603 = vmatmul.mubr.f32.gmra.mrb[0].mxu0 %v1233
  %v1604 = vpop.f32.mrb[0].mxu0
  %v1605 = vadd.f32 0.0, %v1604
  %v1606 = vpop.f32.mrb[0].mxu0
  %1607 = vmatprep.mubr.f32.mxu0 0.0
  %1608 = vmatmul.mubr.f32.gmra.mrb[0].mxu0 %v1236
  %v1609 = vpop.f32.mrb[0].mxu0
  %v1610 = vadd.f32 0.0, %v1609
  %v1611 = vpop.f32.mrb[0].mxu0
  %1612 = vmatprep.mubr.f32.mxu0 0.0
  %1613 = vmatmul.mubr.f32.gmra.mrb[0].mxu0 %v1239
  %v1614 = vpop.f32.mrb[0].mxu0
  %v1615 = vadd.f32 0.0, %v1614
  %v1616 = vpop.f32.mrb[0].mxu0
  %1617 = vmatprep.mubr.f32.mxu0 0.0
  %1618 = vmatmul.mubr.f32.gmra.mrb[0].mxu0 %v1242
  %v1619 = vpop.f32.mrb[0].mxu0
  %v1620 = vadd.f32 0.0, %v1619
  %v1621 = vpop.f32.mrb[0].mxu0
  %1622 = vmatprep.mubr.f32.mxu0 0.0
  %1623 = vmatmul.mubr.f32.gmra.mrb[0].mxu0 %v1245
  %v1624 = vpop.f32.mrb[0].mxu0
  %v1625 = vadd.f32 0.0, %v1624
  %v1626 = vpop.f32.mrb[0].mxu0
  %1627 = vmatprep.mubr.f32.mxu0 0.0
  %1628 = vmatmul.mubr.f32.gmra.mrb[0].mxu0 %v1248
  %v1629 = vpop.f32.mrb[0].mxu0
  %v1630 = vadd.f32 0.0, %v1629
  %v1631 = vpop.f32.mrb[0].mxu0
  %1632 = vmatprep.mubr.f32.mxu0 0.0
  %1633 = vmatmul.mubr.f32.gmra.mrb[0].mxu0 %v1251
  %v1634 = vpop.f32.mrb[0].mxu0
  %v1635 = vadd.f32 0.0, %v1634
  %v1636 = vpop.f32.mrb[0].mxu0
  %1637 = vdwg.mxu0
  %vm1638 = vcmask 785408
  %1639 = vst.msk [vmem:[%s4] sm:$0xff] %vm1638, %v1320
  %1640 = vst.msk [vmem:[%s4 + $0x8] sm:$0xff] %vm1638, %v1325
  %1641 = vst.msk [vmem:[%s4 + $0x10] sm:$0xff] %vm1638, %v1330
  %1642 = vst.msk [vmem:[%s4 + $0x18] sm:$0xff] %vm1638, %v1335
  %1643 = vst.msk [vmem:[%s4 + $0x20] sm:$0xff] %vm1638, %v1340
  %1644 = vst.msk [vmem:[%s4 + $0x28] sm:$0xff] %vm1638, %v1345
  %1645 = vst.msk [vmem:[%s4 + $0x30] sm:$0xff] %vm1638, %v1350
  %1646 = vst.msk [vmem:[%s4 + $0x38] sm:$0xff] %vm1638, %v1355
  %1647 = vst.msk [vmem:[%s4 + $0x40] sm:$0xff] %vm1638, %v1360
  %1648 = vst.msk [vmem:[%s4 + $0x48] sm:$0xff] %vm1638, %v1365
  %1649 = vst.msk [vmem:[%s4 + $0x50] sm:$0xff] %vm1638, %v1370
  %1650 = vst.msk [vmem:[%s4 + $0x58] sm:$0xff] %vm1638, %v1375
  %1651 = vst.msk [vmem:[%s4 + $0x60] sm:$0xff] %vm1638, %v1380
  %1652 = vst.msk [vmem:[%s4 + $0x68] sm:$0xff] %vm1638, %v1385
  %1653 = vst.msk [vmem:[%s4 + $0x70] sm:$0xff] %vm1638, %v1390
  %1654 = vst.msk [vmem:[%s4 + $0x78] sm:$0xff] %vm1638, %v1395
  %1655 = vst.msk [vmem:[%s4 + $0x80] sm:$0xff] %vm1638, %v1400
  %1656 = vst.msk [vmem:[%s4 + $0x88] sm:$0xff] %vm1638, %v1405
  %1657 = vst.msk [vmem:[%s4 + $0x90] sm:$0xff] %vm1638, %v1410
  %1658 = vst.msk [vmem:[%s4 + $0x98] sm:$0xff] %vm1638, %v1415
  %1659 = vst.msk [vmem:[%s4 + $0xa0] sm:$0xff] %vm1638, %v1420
  %1660 = vst.msk [vmem:[%s4 + $0xa8] sm:$0xff] %vm1638, %v1425
  %1661 = vst.msk [vmem:[%s4 + $0xb0] sm:$0xff] %vm1638, %v1430
  %1662 = vst.msk [vmem:[%s4 + $0xb8] sm:$0xff] %vm1638, %v1435
  %1663 = vst.msk [vmem:[%s4 + $0xc0] sm:$0xff] %vm1638, %v1440
  %1664 = vst.msk [vmem:[%s4 + $0xc8] sm:$0xff] %vm1638, %v1445
  %1665 = vst.msk [vmem:[%s4 + $0xd0] sm:$0xff] %vm1638, %v1450
  %1666 = vst.msk [vmem:[%s4 + $0xd8] sm:$0xff] %vm1638, %v1455
  %1667 = vst.msk [vmem:[%s4 + $0xe0] sm:$0xff] %vm1638, %v1460
  %1668 = vst.msk [vmem:[%s4 + $0xe8] sm:$0xff] %vm1638, %v1465
  %1669 = vst.msk [vmem:[%s4 + $0xf0] sm:$0xff] %vm1638, %v1470
  %1670 = vst.msk [vmem:[%s4 + $0xf8] sm:$0xff] %vm1638, %v1475
  %1671 = vst.msk [vmem:[%s4 + $0x100] sm:$0xff] %vm1638, %v1480
  %1672 = vst.msk [vmem:[%s4 + $0x108] sm:$0xff] %vm1638, %v1485
  %1673 = vst.msk [vmem:[%s4 + $0x110] sm:$0xff] %vm1638, %v1490
  %1674 = vst.msk [vmem:[%s4 + $0x118] sm:$0xff] %vm1638, %v1495
  %1675 = vst.msk [vmem:[%s4 + $0x120] sm:$0xff] %vm1638, %v1500
  %1676 = vst.msk [vmem:[%s4 + $0x128] sm:$0xff] %vm1638, %v1505
  %1677 = vst.msk [vmem:[%s4 + $0x130] sm:$0xff] %vm1638, %v1510
  %1678 = vst.msk [vmem:[%s4 + $0x138] sm:$0xff] %vm1638, %v1515
  %1679 = vst.msk [vmem:[%s4 + $0x140] sm:$0xff] %vm1638, %v1520
  %1680 = vst.msk [vmem:[%s4 + $0x148] sm:$0xff] %vm1638, %v1525
  %1681 = vst.msk [vmem:[%s4 + $0x150] sm:$0xff] %vm1638, %v1530
  %1682 = vst.msk [vmem:[%s4 + $0x158] sm:$0xff] %vm1638, %v1535
  %1683 = vst.msk [vmem:[%s4 + $0x160] sm:$0xff] %vm1638, %v1540
  %1684 = vst.msk [vmem:[%s4 + $0x168] sm:$0xff] %vm1638, %v1545
  %1685 = vst.msk [vmem:[%s4 + $0x170] sm:$0xff] %vm1638, %v1550
  %1686 = vst.msk [vmem:[%s4 + $0x178] sm:$0xff] %vm1638, %v1555
  %1687 = vst.msk [vmem:[%s4 + $0x180] sm:$0xff] %vm1638, %v1560
  %1688 = vst.msk [vmem:[%s4 + $0x188] sm:$0xff] %vm1638, %v1565
  %1689 = vst.msk [vmem:[%s4 + $0x190] sm:$0xff] %vm1638, %v1570
  %1690 = vst.msk [vmem:[%s4 + $0x198] sm:$0xff] %vm1638, %v1575
  %1691 = vst.msk [vmem:[%s4 + $0x1a0] sm:$0xff] %vm1638, %v1580
  %1692 = vst.msk [vmem:[%s4 + $0x1a8] sm:$0xff] %vm1638, %v1585
  %1693 = vst.msk [vmem:[%s4 + $0x1b0] sm:$0xff] %vm1638, %v1590
  %1694 = vst.msk [vmem:[%s4 + $0x1b8] sm:$0xff] %vm1638, %v1595
  %1695 = vst.msk [vmem:[%s4 + $0x1c0] sm:$0xff] %vm1638, %v1600
  %1696 = vst.msk [vmem:[%s4 + $0x1c8] sm:$0xff] %vm1638, %v1605
  %1697 = vst.msk [vmem:[%s4 + $0x1d0] sm:$0xff] %vm1638, %v1610
  %1698 = vst.msk [vmem:[%s4 + $0x1d8] sm:$0xff] %vm1638, %v1615
  %1699 = vst.msk [vmem:[%s4 + $0x1e0] sm:$0xff] %vm1638, %v1620
  %1700 = vst.msk [vmem:[%s4 + $0x1e8] sm:$0xff] %vm1638, %v1625
  %1701 = vst.msk [vmem:[%s4 + $0x1f0] sm:$0xff] %vm1638, %v1630
  %1702 = vst.msk [vmem:[%s4 + $0x1f8] sm:$0xff] %vm1638, %v1635
  // Predicated region
  $region18: #{tpu_custom_call.1} parent=0 // pred_check
    _
  $region19: #{tpu_custom_call.1} parent=0 // pred_check_branch
    %1704 = sbr.rel (0) target = $region21
  $region20: #{tpu_custom_call.1} parent=0 // pred_region
    _
  $region21: #{tpu_custom_call.1} parent=0 // pred_fallthru
    _
  // Predicated region
  $region22: #{tpu_custom_call.1} parent=0 // pred_check
    _
  $region23: #{tpu_custom_call.1} parent=0 // pred_check_branch
    %1706 = sbr.rel (0) target = $region25
  $region24: #{tpu_custom_call.1} parent=0 // pred_region
    _
  $region25: #{tpu_custom_call.1} parent=0 // pred_fallthru
    _

</llo_original>
